<compile_context>
chip_gen: v5e
topology: v5e:2x2
jax: 0.10.0
libtpu: 0.0.40
codegen_flags: <defaults>
</compile_context>

<pallas_src>
import math

import jax
import jax.numpy as jnp
from jax.experimental import pallas as pl
from jax.experimental.pallas import tpu as pltpu


C_PAD = 32   # padded channel count (full bf16 sublane packs, stage stacking)


# ----------------------------------------------------------------------------
# Pallas kernel: merged multi-stage MSDecoder on channel-major pixel tiles
#   x     : (1, C_PAD, TP) bf16   (channels on sublanes, pixels on lanes)
#   y     = relu( W1' @ x + shift )     W1' has the BN scale pre-folded
#   z     = sum_c w2[c] * y[c] + b2     (VPU mult + XLU sublane reduce)
#   out   = sigmoid(z)                  (EUP exp + approx reciprocal)
# ----------------------------------------------------------------------------
def _decoder_kernel(x_ref, w1_ref, shift_ref, w2_ref, b2_ref, o_ref):
    s = pl.program_id(0)                               # stage index
    # MXU matmul, bf16 operands, f32 accumulation (BN scale folded into W1)
    y = jnp.dot(w1_ref[0], x_ref[0], preferred_element_type=jnp.float32)
    y = jnp.maximum(y + shift_ref[0], 0.0)             # fused bias/BN shift + ReLU
    # (C,1)-broadcast multiply + cross-sublane reduce instead of an N=1 matmul
    z = jnp.sum(y * w2_ref[0], axis=0, keepdims=True) + b2_ref[s]   # (1, TP)
    o_ref[0] = pl.reciprocal(1.0 + jnp.exp(-z), approx=True)        # sigmoid


def ms_decoder_all(x_list, n, oh, ow, dec_params):
    """Run every stage's MSDecoder in ONE pallas_call.

    x_list[i]: (C_i, P) channel-major bf16 pixel matrix for stage i
               (P = n*oh*ow, identical across stages).
    Returns a list of (n, 1, oh, ow) f32 arrays, one per stage.
    """
    s = len(x_list)
    p = n * oh * ow
    eps = 1e-5

    xs, w1s, shifts, w2s, b2s = [], [], [], [], []
    for x_cp, prm in zip(x_list, dec_params):
        c = x_cp.shape[0]
        pad_c = C_PAD - c
        scale = prm["gamma"] / jnp.sqrt(prm["var"] + eps)               # (C,)
        shift = prm["beta"] + (prm["b1"] - prm["mean"]) * scale         # (C,)
        # fold BN scale into W1 rows in f32, THEN cast to bf16
        w1m = scale[:, None] * prm["w1"].T                              # (Cout, Cin)
        xs.append(jnp.pad(x_cp, ((0, pad_c), (0, 0))))                  # bf16
        w1s.append(jnp.pad(w1m, ((0, pad_c), (0, pad_c))).astype(jnp.bfloat16))
        shifts.append(jnp.pad(shift, (0, pad_c)))
        w2s.append(jnp.pad(prm["w2"].reshape(-1), (0, pad_c)))
        b2s.append(prm["b2"].reshape(()))

    x_stk = jnp.stack(xs, axis=0)                                # (S, 32, P) bf16
    w1_stk = jnp.stack(w1s, axis=0)                              # (S, 32, 32) bf16
    shift_stk = jnp.stack(shifts, axis=0).reshape(s, C_PAD, 1)   # (S, 32, 1) f32
    w2_stk = jnp.stack(w2s, axis=0).reshape(s, C_PAD, 1)         # (S, 32, 1) f32
    b2_stk = jnp.stack(b2s, axis=0)                              # (S,) f32 -> SMEM

    # pixel-tile size: big lane-dense tiles; >=2 pixel steps when there is
    # enough work (even total step count keeps both v7x TensorCores busy),
    # otherwise one big tile (fewer per-step overheads on single-TC v5e/v6e).
    if p >= 2048:
        tp = 1024
    else:
        tp = max(128, pl.cdiv(p, 128) * 128)
    p_pad = pl.cdiv(p, tp) * tp
    if p_pad != p:
        x_stk = jnp.pad(x_stk, ((0, 0), (0, 0), (0, p_pad - p)))

    out = pl.pallas_call(
        _decoder_kernel,
        out_shape=jax.ShapeDtypeStruct((s, 1, p_pad), jnp.float32),
        grid=(s, p_pad // tp),
        in_specs=[
            pl.BlockSpec((1, C_PAD, tp), lambda si, pi: (si, 0, pi)),     # x tile
            pl.BlockSpec((1, C_PAD, C_PAD), lambda si, pi: (si, 0, 0)),   # W1' (bf16)
            pl.BlockSpec((1, C_PAD, 1), lambda si, pi: (si, 0, 0)),       # shift
            pl.BlockSpec((1, C_PAD, 1), lambda si, pi: (si, 0, 0)),       # w2 column
            pl.BlockSpec(memory_space=pltpu.MemorySpace.SMEM),            # b2 scalars
        ],
        out_specs=pl.BlockSpec((1, 1, tp), lambda si, pi: (si, 0, pi)),   # lane-dense
        compiler_params=pltpu.CompilerParams(
            dimension_semantics=("parallel", "parallel")),
    )(x_stk, w1_stk, shift_stk, w2_stk, b2_stk)

    per_stage = out[:, 0, :p].reshape(s, n, oh, ow)
    return [per_stage[i][:, None, :, :] for i in range(s)]       # (N, 1, oh, ow)


# ----------------------------------------------------------------------------
# Plain-JAX glue
# ----------------------------------------------------------------------------
def _resize_matrix(in_size, out_size):
    """Bilinear, align_corners=True resize matrix (out_size, in_size)."""
    scale = (in_size - 1) / (out_size - 1) if out_size > 1 else 0.0
    src = jnp.arange(out_size, dtype=jnp.float32) * jnp.float32(scale)
    i0 = jnp.clip(jnp.floor(src).astype(jnp.int32), 0, in_size - 1)
    i1 = jnp.clip(i0 + 1, 0, in_size - 1)
    frac = src - i0.astype(jnp.float32)
    m = jnp.zeros((out_size, in_size), jnp.float32)
    rows = jnp.arange(out_size)
    m = m.at[rows, i0].add(1.0 - frac)
    m = m.at[rows, i1].add(frac)
    return m


def bilinear_resize_ac(x, out_h, out_w):
    """F.interpolate(x, (out_h, out_w), mode='bilinear', align_corners=True)."""
    _, _, h, w = x.shape
    rh = _resize_matrix(h, out_h)
    rw = _resize_matrix(w, out_w)
    return jnp.einsum("oh,nchw,pw->ncop", rh, x, rw)


def _avg_pool(x, f):
    n, c, h, w = x.shape
    return x.reshape(n, c, h // f, f, w // f, f).mean(axis=(3, 5))


def backbone_forward(x, stage_params):
    """Stand-in backbone: per-stage, per-branch avg-pool + 1x1 projection."""
    # TODO(synk): real Backbone unavailable in the reference source.
    feats = []
    for stage_ws in stage_params:
        stage_feats = []
        for j, wproj in enumerate(stage_ws):
            f = 2 ** (j + 1)
            pooled = _avg_pool(x, f)
            stage_feats.append(jnp.einsum("nchw,cd->ndhw", pooled, wproj))
        feats.append(stage_feats)
    return feats


def msdam_forward(rgb_feats_i, depth_feats_i):
    """MSDAM stage: per-scale fusion -> upsample to scale-0 size -> concat(C).

    DAM is an elementwise add stand-in folded into the resize einsum (no
    standalone Pallas kernel / extra HBM round trip).  Returns the stage
    feature in channel-major pixel layout (Ctot, N*OH*OW) as bf16 so the
    decoder kernel input is a zero-copy reshape.
    """
    n = rgb_feats_i[0].shape[0]
    oh, ow = rgb_feats_i[0].shape[2], rgb_feats_i[0].shape[3]
    cols = []
    for rf, df in zip(rgb_feats_i, depth_feats_i):
        fused = rf + df   # TODO(synk): real DAM unavailable; add stand-in
        rh = _resize_matrix(rf.shape[2], oh)
        rw = _resize_matrix(rf.shape[3], ow)
        up = jnp.einsum("oh,nchw,pw->cnop", rh, fused, rw)   # channel-major out
        cols.append(up.reshape(up.shape[0], n * oh * ow))
    x_cp = jnp.concatenate(cols, axis=0).astype(jnp.bfloat16)
    return x_cp, (n, oh, ow)


def msmrfnet_forward(rgb, depth, params):
    ori_h, ori_w = rgb.shape[2], rgb.shape[3]
    rgb_feature = backbone_forward(rgb, params["rgb_backbone"])
    depth_feature = backbone_forward(depth, params["depth_backbone"])
    num_stages = len(rgb_feature)

    x_list, dims = [], None
    for i in range(num_stages):
        x_cp, d = msdam_forward(rgb_feature[i], depth_feature[i])
        if dims is None:
            dims = d
        assert d == dims, "all stages must share the scale-0 pixel count"
        x_list.append(x_cp)

    n, oh, ow = dims
    ys = ms_decoder_all(x_list, n, oh, ow, params["decoders"])   # list per stage
    outs = [bilinear_resize_ac(y, ori_h, ori_w) for y in ys]
    outs.reverse()
    return outs


# ----------------------------------------------------------------------------
# Deterministic parameter construction
# ----------------------------------------------------------------------------
def make_backbone_params(key, in_ch, stage_channels):
    params = []
    for ch_list in stage_channels:
        stage = []
        for c in ch_list:
            key, k = jax.random.split(key)
            stage.append(jax.random.normal(k, (in_ch, c), jnp.float32) * 0.1)
        params.append(stage)
    return params


def make_decoder_params(key, c):
    ks = jax.random.split(key, 8)
    s = 1.0 / math.sqrt(c)
    return {
        "w1": jax.random.normal(ks[0], (c, c), jnp.float32) * s,
        "b1": jax.random.normal(ks[1], (c,), jnp.float32) * 0.01,
        "gamma": 1.0 + 0.1 * jax.random.normal(ks[2], (c,), jnp.float32),
        "beta": 0.1 * jax.random.normal(ks[3], (c,), jnp.float32),
        "mean": 0.1 * jax.random.normal(ks[4], (c,), jnp.float32),
        "var": 1.0 + 0.1 * jnp.abs(jax.random.normal(ks[5], (c,), jnp.float32)),
        "w2": jax.random.normal(ks[6], (c, 1), jnp.float32) * s,
        "b2": jax.random.normal(ks[7], (1,), jnp.float32) * 0.01,
    }


if __name__ == "__main__":
    key = jax.random.PRNGKey(0)
    k_rgb, k_depth, k_bb_r, k_bb_d, k_dec = jax.random.split(key, 5)

    # small synthetic config (HRNet-like multi-scale channel lists)
    stage_channels = [[4], [4, 8], [4, 8, 16]]
    n, h, w = 2, 64, 64   # -> scale-0 maps 32x32, decoder pixel count 2048

    rgb = jax.random.normal(k_rgb, (n, 3, h, w), jnp.float32)
    depth = jax.random.normal(k_depth, (n, 1, h, w), jnp.float32)

    params = {
        "rgb_backbone": make_backbone_params(k_bb_r, 3, stage_channels),
        "depth_backbone": make_backbone_params(k_bb_d, 1, stage_channels),
        "decoders": [
            make_decoder_params(jax.random.fold_in(k_dec, i), int(sum(cl)))
            for i, cl in enumerate(stage_channels)
        ],
    }

    forward = jax.jit(msmrfnet_forward)
    outs = forward(rgb, depth, params)
    for o in outs:
        jax.block_until_ready(o)
        assert o.shape == (n, 1, h, w), o.shape
        assert bool(jnp.all(jnp.isfinite(o)))
        # sigmoid range (approx-reciprocal EUP path -> allow tiny slack)
        assert bool(jnp.all((o >= -1e-4) & (o <= 1.0 + 1e-3)))

    print("KERNEL_OK")
</pallas_src>

<mosaic_0001>
module attributes {stable_mosaic.version = 11 : i64} {
  func.func @_decoder_kernel(%arg0: i32, %arg1: i32, %arg2: memref<1x32x1024xbf16, #tpu.memory_space<vmem>>, %arg3: memref<1x32x32xbf16, #tpu.memory_space<vmem>>, %arg4: memref<1x32x1xf32, #tpu.memory_space<vmem>>, %arg5: memref<1x32x1xf32, #tpu.memory_space<vmem>>, %arg6: memref<3xf32, #tpu.memory_space<smem>>, %arg7: memref<1x1x1024xf32, #tpu.memory_space<vmem>>) attributes {dimension_semantics = [#tpu.dimension_semantics<parallel>, #tpu.dimension_semantics<parallel>], iteration_bounds = array<i64: 3, 2>, scalar_prefetch = 0 : i64, scratch_operands = 0 : i64, tpu.core_type = #tpu.core_type<tc>, window_params = [{transform_indices = @transform_0, window_bounds = array<i64: 1, 32, 1024>}, {transform_indices = @transform_1, window_bounds = array<i64: 1, 32, 32>}, {transform_indices = @transform_2, window_bounds = array<i64: 1, 32, 1>}, {transform_indices = @transform_3, window_bounds = array<i64: 1, 32, 1>}, {transform_indices = @transform_4, window_bounds = array<i64: 3>}, {transform_indices = @transform_5, window_bounds = array<i64: 1, 1, 1024>}]} {
    %c0 = arith.constant 0 : index
    %c0_0 = arith.constant 0 : index
    %c0_1 = arith.constant 0 : index
    %0 = vector.load %arg3[%c0, %c0_0, %c0_1] : memref<1x32x32xbf16, #tpu.memory_space<vmem>>, vector<1x32x32xbf16>
    %1 = vector.shape_cast %0 : vector<1x32x32xbf16> to vector<32x32xbf16>
    %c0_2 = arith.constant 0 : index
    %c0_3 = arith.constant 0 : index
    %c0_4 = arith.constant 0 : index
    %2 = vector.load %arg2[%c0_2, %c0_3, %c0_4] : memref<1x32x1024xbf16, #tpu.memory_space<vmem>>, vector<1x32x1024xbf16>
    %3 = vector.shape_cast %2 : vector<1x32x1024xbf16> to vector<32x1024xbf16>
    %cst = arith.constant dense<0.000000e+00> : vector<32x1024xf32>
    %4 = tpu.matmul %1, %3, %cst {dimension_numbers = #tpu.dot_dimension_numbers<[1], [0], [0], [1], [0, 0, 1, 1], [], []>} : vector<32x32xbf16>, vector<32x1024xbf16>, vector<32x1024xf32> -> vector<32x1024xf32>
    %c0_5 = arith.constant 0 : index
    %c0_6 = arith.constant 0 : index
    %c0_7 = arith.constant 0 : index
    %5 = vector.load %arg4[%c0_5, %c0_6, %c0_7] : memref<1x32x1xf32, #tpu.memory_space<vmem>>, vector<1x32x1xf32>
    %6 = vector.shape_cast %5 : vector<1x32x1xf32> to vector<32x1xf32>
    %7 = vector.broadcast %6 : vector<32x1xf32> to vector<32x1024xf32>
    %8 = arith.addf %4, %7 : vector<32x1024xf32>
    %cst_8 = arith.constant 0.000000e+00 : f32
    %9 = vector.broadcast %cst_8 : f32 to vector<32x1024xf32>
    %10 = arith.maximumf %8, %9 : vector<32x1024xf32>
    %c0_9 = arith.constant 0 : index
    %c0_10 = arith.constant 0 : index
    %c0_11 = arith.constant 0 : index
    %11 = vector.load %arg5[%c0_9, %c0_10, %c0_11] : memref<1x32x1xf32, #tpu.memory_space<vmem>>, vector<1x32x1xf32>
    %12 = vector.shape_cast %11 : vector<1x32x1xf32> to vector<32x1xf32>
    %13 = vector.broadcast %12 : vector<32x1xf32> to vector<32x1024xf32>
    %14 = arith.mulf %10, %13 : vector<32x1024xf32>
    %cst_12 = arith.constant dense<0.000000e+00> : vector<1024xf32>
    %15 = vector.multi_reduction <add>, %14, %cst_12 [0] : vector<32x1024xf32> to vector<1024xf32>
    %16 = vector.shape_cast %15 : vector<1024xf32> to vector<1x1024xf32>
    %17 = arith.index_cast %arg0 : i32 to index
    %18 = memref.load %arg6[%17] : memref<3xf32, #tpu.memory_space<smem>>
    %19 = vector.broadcast %18 : f32 to vector<1x1024xf32>
    %20 = arith.addf %16, %19 : vector<1x1024xf32>
    %cst_13 = arith.constant 0.000000e+00 : f32
    %21 = vector.broadcast %cst_13 : f32 to vector<1x1024xf32>
    %22 = arith.subf %21, %20 : vector<1x1024xf32>
    %23 = math.exp %22 : vector<1x1024xf32>
    %cst_14 = arith.constant 1.000000e+00 : f32
    %24 = vector.broadcast %cst_14 : f32 to vector<1x1024xf32>
    %25 = arith.addf %24, %23 : vector<1x1024xf32>
    %26 = tpu.reciprocal %25 {approx = true} : vector<1x1024xf32> -> vector<1x1024xf32>
    %c0_15 = arith.constant 0 : index
    %c0_16 = arith.constant 0 : index
    %c0_17 = arith.constant 0 : index
    %27 = vector.load %arg7[%c0_15, %c0_16, %c0_17] : memref<1x1x1024xf32, #tpu.memory_space<vmem>>, vector<1x1x1024xf32>
    %28 = vector.shape_cast %27 : vector<1x1x1024xf32> to vector<1x1024xf32>
    %29 = vector.shape_cast %26 : vector<1x1024xf32> to vector<1x1x1024xf32>
    tpu.vector_store %arg7[%c0_15, %c0_16, %c0_17], %29 {strides = array<i32>} : memref<1x1x1024xf32, #tpu.memory_space<vmem>>, vector<1x1x1024xf32>,
    return
  }
  func.func @transform_0(%arg0: i32, %arg1: i32) -> (i32, i32, i32) {
    %c0_i32 = arith.constant 0 : i32
    %c0_i32_0 = arith.constant 0 : i32
    return %arg0, %c0_i32, %arg1 : i32, i32, i32
  }
  func.func @transform_1(%arg0: i32, %arg1: i32) -> (i32, i32, i32) {
    %c0_i32 = arith.constant 0 : i32
    %c0_i32_0 = arith.constant 0 : i32
    %c0_i32_1 = arith.constant 0 : i32
    return %arg0, %c0_i32, %c0_i32_0 : i32, i32, i32
  }
  func.func @transform_2(%arg0: i32, %arg1: i32) -> (i32, i32, i32) {
    %c0_i32 = arith.constant 0 : i32
    %c0_i32_0 = arith.constant 0 : i32
    %c0_i32_1 = arith.constant 0 : i32
    return %arg0, %c0_i32, %c0_i32_0 : i32, i32, i32
  }
  func.func @transform_3(%arg0: i32, %arg1: i32) -> (i32, i32, i32) {
    %c0_i32 = arith.constant 0 : i32
    %c0_i32_0 = arith.constant 0 : i32
    %c0_i32_1 = arith.constant 0 : i32
    return %arg0, %c0_i32, %c0_i32_0 : i32, i32, i32
  }
  func.func @transform_4(%arg0: i32, %arg1: i32) -> i32 {
    %c0_i32 = arith.constant 0 : i32
    %c0_i32_0 = arith.constant 0 : i32
    return %c0_i32 : i32
  }
  func.func @transform_5(%arg0: i32, %arg1: i32) -> (i32, i32, i32) {
    %c0_i32 = arith.constant 0 : i32
    %c0_i32_0 = arith.constant 0 : i32
    return %arg0, %c0_i32, %arg1 : i32, i32, i32
  }
}

</mosaic_0001>

<llo_original>
// kernel: squeeze.4
$region0: #{squeeze.4}
  %s0 = inlined_call_operand.vmem [shape: bf16[3,2048], index: 0, kind: input, shape index: {}]
  %s1 = inlined_call_operand.vmem [shape: bf16[3,2,32,32], index: 1, kind: output, shape index: {}]
  $region1: #{squeeze.4} parent=0
    #allocation0 [shape = 'u8[98304]{0}', space=vmem, size = 0x18000, scoped, tag = 'scoped mem for output reshape']
    #allocation1 [shape = 'u8[65536]{0}', space=vmem, size = 0x10000, scoped, tag = 'scoped mem for input reshape']
    %s3 = ssub.s32 16, 1
    %s4 = scalar_lea.vmem %s0, 30
    %s5 = sshrl.u32 %s3, 1
    %s6 = sor.u32 %s3, %s5
    %s7 = sand.u32 %s6, 85
    %s8 = sshrl.u32 %s7, 1
    %s9 = sor.u32 %s7, %s8
    %s10 = sand.u32 51, %s9
    %s11 = sshrl.u32 %s10, 2
    %s12 = sor.u32 %s10, %s11
    %s13 = sand.u32 15, %s12
    %v14 = vld [vmem:[%s4] sm:%s13]
    %v15 = vunpack.c.l.bf16 %v14
    %v16 = vunpack.c.h.bf16 %v14
    %s17 = scalar_lea.vmem [#allocation1], 120
    %18 = vst [vmem:[%s17] sm:%s3] %v15
    %s19 = scalar_lea.vmem %s0, 28
    %s20 = sshrl.u32 %s3, 1
    %s21 = sor.u32 %s3, %s20
    %s22 = sand.u32 %s21, 85
    %s23 = sshrl.u32 %s22, 1
    %s24 = sor.u32 %s22, %s23
    %s25 = sand.u32 51, %s24
    %s26 = sshrl.u32 %s25, 2
    %s27 = sor.u32 %s25, %s26
    %s28 = sand.u32 15, %s27
    %v29 = vld [vmem:[%s19] sm:%s28]
    %v30 = vunpack.c.l.bf16 %v29
    %v31 = vunpack.c.h.bf16 %v29
    %s32 = scalar_lea.vmem [#allocation1], 112
    %33 = vst [vmem:[%s32] sm:%s3] %v30
    %s34 = scalar_lea.vmem %s0, 26
    %s35 = sshrl.u32 %s3, 1
    %s36 = sor.u32 %s3, %s35
    %s37 = sand.u32 %s36, 85
    %s38 = sshrl.u32 %s37, 1
    %s39 = sor.u32 %s37, %s38
    %s40 = sand.u32 51, %s39
    %s41 = sshrl.u32 %s40, 2
    %s42 = sor.u32 %s40, %s41
    %s43 = sand.u32 15, %s42
    %v44 = vld [vmem:[%s34] sm:%s43]
    %v45 = vunpack.c.l.bf16 %v44
    %v46 = vunpack.c.h.bf16 %v44
    %s47 = scalar_lea.vmem [#allocation1], 104
    %48 = vst [vmem:[%s47] sm:%s3] %v45
    %s49 = scalar_lea.vmem %s0, 24
    %s50 = sshrl.u32 %s3, 1
    %s51 = sor.u32 %s3, %s50
    %s52 = sand.u32 %s51, 85
    %s53 = sshrl.u32 %s52, 1
    %s54 = sor.u32 %s52, %s53
    %s55 = sand.u32 51, %s54
    %s56 = sshrl.u32 %s55, 2
    %s57 = sor.u32 %s55, %s56
    %s58 = sand.u32 15, %s57
    %v59 = vld [vmem:[%s49] sm:%s58]
    %v60 = vunpack.c.l.bf16 %v59
    %v61 = vunpack.c.h.bf16 %v59
    %s62 = scalar_lea.vmem [#allocation1], 96
    %63 = vst [vmem:[%s62] sm:%s3] %v60
    %s64 = scalar_lea.vmem %s0, 22
    %s65 = sshrl.u32 %s3, 1
    %s66 = sor.u32 %s3, %s65
    %s67 = sand.u32 %s66, 85
    %s68 = sshrl.u32 %s67, 1
    %s69 = sor.u32 %s67, %s68
    %s70 = sand.u32 51, %s69
    %s71 = sshrl.u32 %s70, 2
    %s72 = sor.u32 %s70, %s71
    %s73 = sand.u32 15, %s72
    %v74 = vld [vmem:[%s64] sm:%s73]
    %v75 = vunpack.c.l.bf16 %v74
    %v76 = vunpack.c.h.bf16 %v74
    %s77 = scalar_lea.vmem [#allocation1], 88
    %78 = vst [vmem:[%s77] sm:%s3] %v75
    %s79 = scalar_lea.vmem %s0, 20
    %s80 = sshrl.u32 %s3, 1
    %s81 = sor.u32 %s3, %s80
    %s82 = sand.u32 %s81, 85
    %s83 = sshrl.u32 %s82, 1
    %s84 = sor.u32 %s82, %s83
    %s85 = sand.u32 51, %s84
    %s86 = sshrl.u32 %s85, 2
    %s87 = sor.u32 %s85, %s86
    %s88 = sand.u32 15, %s87
    %v89 = vld [vmem:[%s79] sm:%s88]
    %v90 = vunpack.c.l.bf16 %v89
    %v91 = vunpack.c.h.bf16 %v89
    %s92 = scalar_lea.vmem [#allocation1], 80
    %93 = vst [vmem:[%s92] sm:%s3] %v90
    %s94 = scalar_lea.vmem %s0, 18
    %s95 = sshrl.u32 %s3, 1
    %s96 = sor.u32 %s3, %s95
    %s97 = sand.u32 %s96, 85
    %s98 = sshrl.u32 %s97, 1
    %s99 = sor.u32 %s97, %s98
    %s100 = sand.u32 51, %s99
    %s101 = sshrl.u32 %s100, 2
    %s102 = sor.u32 %s100, %s101
    %s103 = sand.u32 15, %s102
    %v104 = vld [vmem:[%s94] sm:%s103]
    %v105 = vunpack.c.l.bf16 %v104
    %v106 = vunpack.c.h.bf16 %v104
    %s107 = scalar_lea.vmem [#allocation1], 72
    %108 = vst [vmem:[%s107] sm:%s3] %v105
    %s109 = scalar_lea.vmem %s0, 16
    %s110 = sshrl.u32 %s3, 1
    %s111 = sor.u32 %s3, %s110
    %s112 = sand.u32 %s111, 85
    %s113 = sshrl.u32 %s112, 1
    %s114 = sor.u32 %s112, %s113
    %s115 = sand.u32 51, %s114
    %s116 = sshrl.u32 %s115, 2
    %s117 = sor.u32 %s115, %s116
    %s118 = sand.u32 15, %s117
    %v119 = vld [vmem:[%s109] sm:%s118]
    %v120 = vunpack.c.l.bf16 %v119
    %v121 = vunpack.c.h.bf16 %v119
    %s122 = scalar_lea.vmem [#allocation1], 64
    %123 = vst [vmem:[%s122] sm:%s3] %v120
    %s124 = scalar_lea.vmem %s0, 14
    %s125 = sshrl.u32 %s3, 1
    %s126 = sor.u32 %s3, %s125
    %s127 = sand.u32 %s126, 85
    %s128 = sshrl.u32 %s127, 1
    %s129 = sor.u32 %s127, %s128
    %s130 = sand.u32 51, %s129
    %s131 = sshrl.u32 %s130, 2
    %s132 = sor.u32 %s130, %s131
    %s133 = sand.u32 15, %s132
    %v134 = vld [vmem:[%s124] sm:%s133]
    %v135 = vunpack.c.l.bf16 %v134
    %v136 = vunpack.c.h.bf16 %v134
    %s137 = scalar_lea.vmem [#allocation1], 56
    %138 = vst [vmem:[%s137] sm:%s3] %v135
    %s139 = scalar_lea.vmem %s0, 12
    %s140 = sshrl.u32 %s3, 1
    %s141 = sor.u32 %s3, %s140
    %s142 = sand.u32 %s141, 85
    %s143 = sshrl.u32 %s142, 1
    %s144 = sor.u32 %s142, %s143
    %s145 = sand.u32 51, %s144
    %s146 = sshrl.u32 %s145, 2
    %s147 = sor.u32 %s145, %s146
    %s148 = sand.u32 15, %s147
    %v149 = vld [vmem:[%s139] sm:%s148]
    %v150 = vunpack.c.l.bf16 %v149
    %v151 = vunpack.c.h.bf16 %v149
    %s152 = scalar_lea.vmem [#allocation1], 48
    %153 = vst [vmem:[%s152] sm:%s3] %v150
    %s154 = scalar_lea.vmem %s0, 10
    %s155 = sshrl.u32 %s3, 1
    %s156 = sor.u32 %s3, %s155
    %s157 = sand.u32 %s156, 85
    %s158 = sshrl.u32 %s157, 1
    %s159 = sor.u32 %s157, %s158
    %s160 = sand.u32 51, %s159
    %s161 = sshrl.u32 %s160, 2
    %s162 = sor.u32 %s160, %s161
    %s163 = sand.u32 15, %s162
    %v164 = vld [vmem:[%s154] sm:%s163]
    %v165 = vunpack.c.l.bf16 %v164
    %v166 = vunpack.c.h.bf16 %v164
    %s167 = scalar_lea.vmem [#allocation1], 40
    %168 = vst [vmem:[%s167] sm:%s3] %v165
    %s169 = scalar_lea.vmem %s0, 8
    %s170 = sshrl.u32 %s3, 1
    %s171 = sor.u32 %s3, %s170
    %s172 = sand.u32 %s171, 85
    %s173 = sshrl.u32 %s172, 1
    %s174 = sor.u32 %s172, %s173
    %s175 = sand.u32 51, %s174
    %s176 = sshrl.u32 %s175, 2
    %s177 = sor.u32 %s175, %s176
    %s178 = sand.u32 15, %s177
    %v179 = vld [vmem:[%s169] sm:%s178]
    %v180 = vunpack.c.l.bf16 %v179
    %v181 = vunpack.c.h.bf16 %v179
    %s182 = scalar_lea.vmem [#allocation1], 32
    %183 = vst [vmem:[%s182] sm:%s3] %v180
    %s184 = scalar_lea.vmem %s0, 6
    %s185 = sshrl.u32 %s3, 1
    %s186 = sor.u32 %s3, %s185
    %s187 = sand.u32 %s186, 85
    %s188 = sshrl.u32 %s187, 1
    %s189 = sor.u32 %s187, %s188
    %s190 = sand.u32 51, %s189
    %s191 = sshrl.u32 %s190, 2
    %s192 = sor.u32 %s190, %s191
    %s193 = sand.u32 15, %s192
    %v194 = vld [vmem:[%s184] sm:%s193]
    %v195 = vunpack.c.l.bf16 %v194
    %v196 = vunpack.c.h.bf16 %v194
    %s197 = scalar_lea.vmem [#allocation1], 24
    %198 = vst [vmem:[%s197] sm:%s3] %v195
    %s199 = scalar_lea.vmem %s0, 4
    %s200 = sshrl.u32 %s3, 1
    %s201 = sor.u32 %s3, %s200
    %s202 = sand.u32 %s201, 85
    %s203 = sshrl.u32 %s202, 1
    %s204 = sor.u32 %s202, %s203
    %s205 = sand.u32 51, %s204
    %s206 = sshrl.u32 %s205, 2
    %s207 = sor.u32 %s205, %s206
    %s208 = sand.u32 15, %s207
    %v209 = vld [vmem:[%s199] sm:%s208]
    %v210 = vunpack.c.l.bf16 %v209
    %v211 = vunpack.c.h.bf16 %v209
    %s212 = scalar_lea.vmem [#allocation1], 16
    %213 = vst [vmem:[%s212] sm:%s3] %v210
    %s214 = scalar_lea.vmem %s0, 2
    %s215 = sshrl.u32 %s3, 1
    %s216 = sor.u32 %s3, %s215
    %s217 = sand.u32 %s216, 85
    %s218 = sshrl.u32 %s217, 1
    %s219 = sor.u32 %s217, %s218
    %s220 = sand.u32 51, %s219
    %s221 = sshrl.u32 %s220, 2
    %s222 = sor.u32 %s220, %s221
    %s223 = sand.u32 15, %s222
    %v224 = vld [vmem:[%s214] sm:%s223]
    %v225 = vunpack.c.l.bf16 %v224
    %v226 = vunpack.c.h.bf16 %v224
    %s227 = scalar_lea.vmem [#allocation1], 8
    %228 = vst [vmem:[%s227] sm:%s3] %v225
    %s229 = sshrl.u32 %s3, 1
    %s230 = sor.u32 %s3, %s229
    %s231 = sand.u32 %s230, 85
    %s232 = sshrl.u32 %s231, 1
    %s233 = sor.u32 %s231, %s232
    %s234 = sand.u32 51, %s233
    %s235 = sshrl.u32 %s234, 2
    %s236 = sor.u32 %s234, %s235
    %s237 = sand.u32 15, %s236
    %v238 = vld [vmem:[%s0] sm:%s237]
    %v239 = vunpack.c.l.bf16 %v238
    %v240 = vunpack.c.h.bf16 %v238
    %241 = vst [vmem:[#allocation1] sm:%s3] %v239
    %v242 = vld [vmem:[#allocation1] sm:$0x7]
    %vm243 = vcmask 261120
    %244 = vst.msk [vmem:[#allocation0] sm:$0x1] %vm243, %v242
    %s245 = scalar_lea.vmem [#allocation0], 63
    %246 = vst.msk [vmem:[%s245] sm:$0x2] %vm243, %v242
    %s247 = scalar_lea.vmem [#allocation0], 126
    %248 = vst.msk [vmem:[%s247] sm:$0x4] %vm243, %v242
    %s249 = scalar_lea.vmem [#allocation1], 8
    %v250 = vld [vmem:[%s249] sm:$0x7]
    %vm251 = vcmask 261120
    %s252 = scalar_lea.vmem [#allocation0], 4
    %253 = vst.msk [vmem:[%s252] sm:$0x1] %vm251, %v250
    %s254 = scalar_lea.vmem [#allocation0], 67
    %255 = vst.msk [vmem:[%s254] sm:$0x2] %vm251, %v250
    %s256 = scalar_lea.vmem [#allocation0], 130
    %257 = vst.msk [vmem:[%s256] sm:$0x4] %vm251, %v250
    %s258 = scalar_lea.vmem [#allocation1], 16
    %v259 = vld [vmem:[%s258] sm:$0x7]
    %vm260 = vcmask 261120
    %s261 = scalar_lea.vmem [#allocation0], 8
    %262 = vst.msk [vmem:[%s261] sm:$0x1] %vm260, %v259
    %s263 = scalar_lea.vmem [#allocation0], 71
    %264 = vst.msk [vmem:[%s263] sm:$0x2] %vm260, %v259
    %s265 = scalar_lea.vmem [#allocation0], 134
    %266 = vst.msk [vmem:[%s265] sm:$0x4] %vm260, %v259
    %s267 = scalar_lea.vmem [#allocation1], 24
    %v268 = vld [vmem:[%s267] sm:$0x7]
    %vm269 = vcmask 261120
    %s270 = scalar_lea.vmem [#allocation0], 12
    %271 = vst.msk [vmem:[%s270] sm:$0x1] %vm269, %v268
    %s272 = scalar_lea.vmem [#allocation0], 75
    %273 = vst.msk [vmem:[%s272] sm:$0x2] %vm269, %v268
    %s274 = scalar_lea.vmem [#allocation0], 138
    %275 = vst.msk [vmem:[%s274] sm:$0x4] %vm269, %v268
    %s276 = scalar_lea.vmem [#allocation1], 32
    %v277 = vld [vmem:[%s276] sm:$0x7]
    %vm278 = vcmask 261120
    %s279 = scalar_lea.vmem [#allocation0], 16
    %280 = vst.msk [vmem:[%s279] sm:$0x1] %vm278, %v277
    %s281 = scalar_lea.vmem [#allocation0], 79
    %282 = vst.msk [vmem:[%s281] sm:$0x2] %vm278, %v277
    %s283 = scalar_lea.vmem [#allocation0], 142
    %284 = vst.msk [vmem:[%s283] sm:$0x4] %vm278, %v277
    %s285 = scalar_lea.vmem [#allocation1], 40
    %v286 = vld [vmem:[%s285] sm:$0x7]
    %vm287 = vcmask 261120
    %s288 = scalar_lea.vmem [#allocation0], 20
    %289 = vst.msk [vmem:[%s288] sm:$0x1] %vm287, %v286
    %s290 = scalar_lea.vmem [#allocation0], 83
    %291 = vst.msk [vmem:[%s290] sm:$0x2] %vm287, %v286
    %s292 = scalar_lea.vmem [#allocation0], 146
    %293 = vst.msk [vmem:[%s292] sm:$0x4] %vm287, %v286
    %s294 = scalar_lea.vmem [#allocation1], 48
    %v295 = vld [vmem:[%s294] sm:$0x7]
    %vm296 = vcmask 261120
    %s297 = scalar_lea.vmem [#allocation0], 24
    %298 = vst.msk [vmem:[%s297] sm:$0x1] %vm296, %v295
    %s299 = scalar_lea.vmem [#allocation0], 87
    %300 = vst.msk [vmem:[%s299] sm:$0x2] %vm296, %v295
    %s301 = scalar_lea.vmem [#allocation0], 150
    %302 = vst.msk [vmem:[%s301] sm:$0x4] %vm296, %v295
    %s303 = scalar_lea.vmem [#allocation1], 56
    %v304 = vld [vmem:[%s303] sm:$0x7]
    %vm305 = vcmask 261120
    %s306 = scalar_lea.vmem [#allocation0], 28
    %307 = vst.msk [vmem:[%s306] sm:$0x1] %vm305, %v304
    %s308 = scalar_lea.vmem [#allocation0], 91
    %309 = vst.msk [vmem:[%s308] sm:$0x2] %vm305, %v304
    %s310 = scalar_lea.vmem [#allocation0], 154
    %311 = vst.msk [vmem:[%s310] sm:$0x4] %vm305, %v304
    %s312 = scalar_lea.vmem [#allocation1], 64
    %v313 = vld [vmem:[%s312] sm:$0x7]
    %vm314 = vcmask 261120
    %s315 = scalar_lea.vmem [#allocation0], 32
    %316 = vst.msk [vmem:[%s315] sm:$0x1] %vm314, %v313
    %s317 = scalar_lea.vmem [#allocation0], 95
    %318 = vst.msk [vmem:[%s317] sm:$0x2] %vm314, %v313
    %s319 = scalar_lea.vmem [#allocation0], 158
    %320 = vst.msk [vmem:[%s319] sm:$0x4] %vm314, %v313
    %s321 = scalar_lea.vmem [#allocation1], 72
    %v322 = vld [vmem:[%s321] sm:$0x7]
    %vm323 = vcmask 261120
    %s324 = scalar_lea.vmem [#allocation0], 36
    %325 = vst.msk [vmem:[%s324] sm:$0x1] %vm323, %v322
    %s326 = scalar_lea.vmem [#allocation0], 99
    %327 = vst.msk [vmem:[%s326] sm:$0x2] %vm323, %v322
    %s328 = scalar_lea.vmem [#allocation0], 162
    %329 = vst.msk [vmem:[%s328] sm:$0x4] %vm323, %v322
    %s330 = scalar_lea.vmem [#allocation1], 80
    %v331 = vld [vmem:[%s330] sm:$0x7]
    %vm332 = vcmask 261120
    %s333 = scalar_lea.vmem [#allocation0], 40
    %334 = vst.msk [vmem:[%s333] sm:$0x1] %vm332, %v331
    %s335 = scalar_lea.vmem [#allocation0], 103
    %336 = vst.msk [vmem:[%s335] sm:$0x2] %vm332, %v331
    %s337 = scalar_lea.vmem [#allocation0], 166
    %338 = vst.msk [vmem:[%s337] sm:$0x4] %vm332, %v331
    %s339 = scalar_lea.vmem [#allocation1], 88
    %v340 = vld [vmem:[%s339] sm:$0x7]
    %vm341 = vcmask 261120
    %s342 = scalar_lea.vmem [#allocation0], 44
    %343 = vst.msk [vmem:[%s342] sm:$0x1] %vm341, %v340
    %s344 = scalar_lea.vmem [#allocation0], 107
    %345 = vst.msk [vmem:[%s344] sm:$0x2] %vm341, %v340
    %s346 = scalar_lea.vmem [#allocation0], 170
    %347 = vst.msk [vmem:[%s346] sm:$0x4] %vm341, %v340
    %s348 = scalar_lea.vmem [#allocation1], 96
    %v349 = vld [vmem:[%s348] sm:$0x7]
    %vm350 = vcmask 261120
    %s351 = scalar_lea.vmem [#allocation0], 48
    %352 = vst.msk [vmem:[%s351] sm:$0x1] %vm350, %v349
    %s353 = scalar_lea.vmem [#allocation0], 111
    %354 = vst.msk [vmem:[%s353] sm:$0x2] %vm350, %v349
    %s355 = scalar_lea.vmem [#allocation0], 174
    %356 = vst.msk [vmem:[%s355] sm:$0x4] %vm350, %v349
    %s357 = scalar_lea.vmem [#allocation1], 104
    %v358 = vld [vmem:[%s357] sm:$0x7]
    %vm359 = vcmask 261120
    %s360 = scalar_lea.vmem [#allocation0], 52
    %361 = vst.msk [vmem:[%s360] sm:$0x1] %vm359, %v358
    %s362 = scalar_lea.vmem [#allocation0], 115
    %363 = vst.msk [vmem:[%s362] sm:$0x2] %vm359, %v358
    %s364 = scalar_lea.vmem [#allocation0], 178
    %365 = vst.msk [vmem:[%s364] sm:$0x4] %vm359, %v358
    %s366 = scalar_lea.vmem [#allocation1], 112
    %v367 = vld [vmem:[%s366] sm:$0x7]
    %vm368 = vcmask 261120
    %s369 = scalar_lea.vmem [#allocation0], 56
    %370 = vst.msk [vmem:[%s369] sm:$0x1] %vm368, %v367
    %s371 = scalar_lea.vmem [#allocation0], 119
    %372 = vst.msk [vmem:[%s371] sm:$0x2] %vm368, %v367
    %s373 = scalar_lea.vmem [#allocation0], 182
    %374 = vst.msk [vmem:[%s373] sm:$0x4] %vm368, %v367
    %s375 = scalar_lea.vmem [#allocation1], 120
    %v376 = vld [vmem:[%s375] sm:$0x7]
    %vm377 = vcmask 261120
    %s378 = scalar_lea.vmem [#allocation0], 60
    %379 = vst.msk [vmem:[%s378] sm:$0x1] %vm377, %v376
    %s380 = scalar_lea.vmem [#allocation0], 123
    %381 = vst.msk [vmem:[%s380] sm:$0x2] %vm377, %v376
    %s382 = scalar_lea.vmem [#allocation0], 186
    %383 = vst.msk [vmem:[%s382] sm:$0x4] %vm377, %v376
    %v384 = vld [vmem:[#allocation1] ss:$8 sm:$0xf]
    %v385 = vld [vmem:[#allocation1] ss:$8 sm:$0xf0]
    %vm386 = vcmask 1047556
    %v387 = vsel %vm386, %v385, %v384
    %388 = vrot.lane.b32.xlu0 %v387, 96
    %v389 = vpop.permute.xlu0 %388
    %vm390 = vcmask 261120
    %s391 = scalar_lea.vmem [#allocation0], 1
    %392 = vst.msk [vmem:[%s391] ss:$4 sm:$0xff] %vm390, %v389
    %s393 = scalar_lea.vmem [#allocation1], 1
    %v394 = vld [vmem:[%s393] ss:$8 sm:$0xf]
    %s395 = scalar_lea.vmem [#allocation1], 1
    %v396 = vld [vmem:[%s395] ss:$8 sm:$0xf0]
    %vm397 = vcmask 1047556
    %v398 = vsel %vm397, %v396, %v394
    %399 = vrot.lane.b32.xlu0 %v398, 96
    %v400 = vpop.permute.xlu0 %399
    %vm401 = vcmask 261120
    %s402 = scalar_lea.vmem [#allocation0], 65
    %403 = vst.msk [vmem:[%s402] ss:$4 sm:$0xff] %vm401, %v400
    %s404 = scalar_lea.vmem [#allocation1], 2
    %v405 = vld [vmem:[%s404] ss:$8 sm:$0xf]
    %s406 = scalar_lea.vmem [#allocation1], 2
    %v407 = vld [vmem:[%s406] ss:$8 sm:$0xf0]
    %vm408 = vcmask 1047556
    %v409 = vsel %vm408, %v407, %v405
    %410 = vrot.lane.b32.xlu0 %v409, 96
    %v411 = vpop.permute.xlu0 %410
    %vm412 = vcmask 261120
    %s413 = scalar_lea.vmem [#allocation0], 129
    %414 = vst.msk [vmem:[%s413] ss:$4 sm:$0xff] %vm412, %v411
    %s415 = scalar_lea.vmem [#allocation1], 64
    %v416 = vld [vmem:[%s415] ss:$8 sm:$0xf]
    %s417 = scalar_lea.vmem [#allocation1], 64
    %v418 = vld [vmem:[%s417] ss:$8 sm:$0xf0]
    %vm419 = vcmask 1047556
    %v420 = vsel %vm419, %v418, %v416
    %421 = vrot.lane.b32.xlu0 %v420, 96
    %v422 = vpop.permute.xlu0 %421
    %vm423 = vcmask 261120
    %s424 = scalar_lea.vmem [#allocation0], 33
    %425 = vst.msk [vmem:[%s424] ss:$4 sm:$0xff] %vm423, %v422
    %s426 = scalar_lea.vmem [#allocation1], 65
    %v427 = vld [vmem:[%s426] ss:$8 sm:$0xf]
    %s428 = scalar_lea.vmem [#allocation1], 65
    %v429 = vld [vmem:[%s428] ss:$8 sm:$0xf0]
    %vm430 = vcmask 1047556
    %v431 = vsel %vm430, %v429, %v427
    %432 = vrot.lane.b32.xlu0 %v431, 96
    %v433 = vpop.permute.xlu0 %432
    %vm434 = vcmask 261120
    %s435 = scalar_lea.vmem [#allocation0], 97
    %436 = vst.msk [vmem:[%s435] ss:$4 sm:$0xff] %vm434, %v433
    %s437 = scalar_lea.vmem [#allocation1], 66
    %v438 = vld [vmem:[%s437] ss:$8 sm:$0xf]
    %s439 = scalar_lea.vmem [#allocation1], 66
    %v440 = vld [vmem:[%s439] ss:$8 sm:$0xf0]
    %vm441 = vcmask 1047556
    %v442 = vsel %vm441, %v440, %v438
    %443 = vrot.lane.b32.xlu0 %v442, 96
    %v444 = vpop.permute.xlu0 %443
    %vm445 = vcmask 261120
    %s446 = scalar_lea.vmem [#allocation0], 161
    %447 = vst.msk [vmem:[%s446] ss:$4 sm:$0xff] %vm445, %v444
    %v448 = vld [vmem:[#allocation1] ss:$8 sm:$0xf]
    %v449 = vld [vmem:[#allocation1] ss:$8 sm:$0xf0]
    %vm450 = vcmask 1047556
    %v451 = vsel %vm450, %v449, %v448
    %452 = vrot.lane.b32.xlu0 %v451, 64
    %v453 = vpop.permute.xlu0 %452
    %vm454 = vcmask 261120
    %s455 = scalar_lea.vmem [#allocation0], 2
    %456 = vst.msk [vmem:[%s455] ss:$4 sm:$0xff] %vm454, %v453
    %s457 = scalar_lea.vmem [#allocation1], 1
    %v458 = vld [vmem:[%s457] ss:$8 sm:$0xf]
    %s459 = scalar_lea.vmem [#allocation1], 1
    %v460 = vld [vmem:[%s459] ss:$8 sm:$0xf0]
    %vm461 = vcmask 1047556
    %v462 = vsel %vm461, %v460, %v458
    %463 = vrot.lane.b32.xlu0 %v462, 64
    %v464 = vpop.permute.xlu0 %463
    %vm465 = vcmask 261120
    %s466 = scalar_lea.vmem [#allocation0], 66
    %467 = vst.msk [vmem:[%s466] ss:$4 sm:$0xff] %vm465, %v464
    %s468 = scalar_lea.vmem [#allocation1], 2
    %v469 = vld [vmem:[%s468] ss:$8 sm:$0xf]
    %s470 = scalar_lea.vmem [#allocation1], 2
    %v471 = vld [vmem:[%s470] ss:$8 sm:$0xf0]
    %vm472 = vcmask 1047556
    %v473 = vsel %vm472, %v471, %v469
    %474 = vrot.lane.b32.xlu0 %v473, 64
    %v475 = vpop.permute.xlu0 %474
    %vm476 = vcmask 261120
    %s477 = scalar_lea.vmem [#allocation0], 130
    %478 = vst.msk [vmem:[%s477] ss:$4 sm:$0xff] %vm476, %v475
    %s479 = scalar_lea.vmem [#allocation1], 64
    %v480 = vld [vmem:[%s479] ss:$8 sm:$0xf]
    %s481 = scalar_lea.vmem [#allocation1], 64
    %v482 = vld [vmem:[%s481] ss:$8 sm:$0xf0]
    %vm483 = vcmask 1047556
    %v484 = vsel %vm483, %v482, %v480
    %485 = vrot.lane.b32.xlu0 %v484, 64
    %v486 = vpop.permute.xlu0 %485
    %vm487 = vcmask 261120
    %s488 = scalar_lea.vmem [#allocation0], 34
    %489 = vst.msk [vmem:[%s488] ss:$4 sm:$0xff] %vm487, %v486
    %s490 = scalar_lea.vmem [#allocation1], 65
    %v491 = vld [vmem:[%s490] ss:$8 sm:$0xf]
    %s492 = scalar_lea.vmem [#allocation1], 65
    %v493 = vld [vmem:[%s492] ss:$8 sm:$0xf0]
    %vm494 = vcmask 1047556
    %v495 = vsel %vm494, %v493, %v491
    %496 = vrot.lane.b32.xlu0 %v495, 64
    %v497 = vpop.permute.xlu0 %496
    %vm498 = vcmask 261120
    %s499 = scalar_lea.vmem [#allocation0], 98
    %500 = vst.msk [vmem:[%s499] ss:$4 sm:$0xff] %vm498, %v497
    %s501 = scalar_lea.vmem [#allocation1], 66
    %v502 = vld [vmem:[%s501] ss:$8 sm:$0xf]
    %s503 = scalar_lea.vmem [#allocation1], 66
    %v504 = vld [vmem:[%s503] ss:$8 sm:$0xf0]
    %vm505 = vcmask 1047556
    %v506 = vsel %vm505, %v504, %v502
    %507 = vrot.lane.b32.xlu0 %v506, 64
    %v508 = vpop.permute.xlu0 %507
    %vm509 = vcmask 261120
    %s510 = scalar_lea.vmem [#allocation0], 162
    %511 = vst.msk [vmem:[%s510] ss:$4 sm:$0xff] %vm509, %v508
    %v512 = vld [vmem:[#allocation1] ss:$8 sm:$0xf]
    %v513 = vld [vmem:[#allocation1] ss:$8 sm:$0xf0]
    %vm514 = vcmask 1047556
    %v515 = vsel %vm514, %v513, %v512
    %516 = vrot.lane.b32.xlu0 %v515, 32
    %v517 = vpop.permute.xlu0 %516
    %vm518 = vcmask 261120
    %s519 = scalar_lea.vmem [#allocation0], 3
    %520 = vst.msk [vmem:[%s519] ss:$4 sm:$0xff] %vm518, %v517
    %s521 = scalar_lea.vmem [#allocation1], 1
    %v522 = vld [vmem:[%s521] ss:$8 sm:$0xf]
    %s523 = scalar_lea.vmem [#allocation1], 1
    %v524 = vld [vmem:[%s523] ss:$8 sm:$0xf0]
    %vm525 = vcmask 1047556
    %v526 = vsel %vm525, %v524, %v522
    %527 = vrot.lane.b32.xlu0 %v526, 32
    %v528 = vpop.permute.xlu0 %527
    %vm529 = vcmask 261120
    %s530 = scalar_lea.vmem [#allocation0], 67
    %531 = vst.msk [vmem:[%s530] ss:$4 sm:$0xff] %vm529, %v528
    %s532 = scalar_lea.vmem [#allocation1], 2
    %v533 = vld [vmem:[%s532] ss:$8 sm:$0xf]
    %s534 = scalar_lea.vmem [#allocation1], 2
    %v535 = vld [vmem:[%s534] ss:$8 sm:$0xf0]
    %vm536 = vcmask 1047556
    %v537 = vsel %vm536, %v535, %v533
    %538 = vrot.lane.b32.xlu0 %v537, 32
    %v539 = vpop.permute.xlu0 %538
    %vm540 = vcmask 261120
    %s541 = scalar_lea.vmem [#allocation0], 131
    %542 = vst.msk [vmem:[%s541] ss:$4 sm:$0xff] %vm540, %v539
    %s543 = scalar_lea.vmem [#allocation1], 64
    %v544 = vld [vmem:[%s543] ss:$8 sm:$0xf]
    %s545 = scalar_lea.vmem [#allocation1], 64
    %v546 = vld [vmem:[%s545] ss:$8 sm:$0xf0]
    %vm547 = vcmask 1047556
    %v548 = vsel %vm547, %v546, %v544
    %549 = vrot.lane.b32.xlu0 %v548, 32
    %v550 = vpop.permute.xlu0 %549
    %vm551 = vcmask 261120
    %s552 = scalar_lea.vmem [#allocation0], 35
    %553 = vst.msk [vmem:[%s552] ss:$4 sm:$0xff] %vm551, %v550
    %s554 = scalar_lea.vmem [#allocation1], 65
    %v555 = vld [vmem:[%s554] ss:$8 sm:$0xf]
    %s556 = scalar_lea.vmem [#allocation1], 65
    %v557 = vld [vmem:[%s556] ss:$8 sm:$0xf0]
    %vm558 = vcmask 1047556
    %v559 = vsel %vm558, %v557, %v555
    %560 = vrot.lane.b32.xlu0 %v559, 32
    %v561 = vpop.permute.xlu0 %560
    %vm562 = vcmask 261120
    %s563 = scalar_lea.vmem [#allocation0], 99
    %564 = vst.msk [vmem:[%s563] ss:$4 sm:$0xff] %vm562, %v561
    %s565 = scalar_lea.vmem [#allocation1], 66
    %v566 = vld [vmem:[%s565] ss:$8 sm:$0xf]
    %s567 = scalar_lea.vmem [#allocation1], 66
    %v568 = vld [vmem:[%s567] ss:$8 sm:$0xf0]
    %vm569 = vcmask 1047556
    %v570 = vsel %vm569, %v568, %v566
    %571 = vrot.lane.b32.xlu0 %v570, 32
    %v572 = vpop.permute.xlu0 %571
    %vm573 = vcmask 261120
    %s574 = scalar_lea.vmem [#allocation0], 163
    %575 = vst.msk [vmem:[%s574] ss:$4 sm:$0xff] %vm573, %v572
    %s577 = ssub.s32 256, 1
    %v578 = vld [vmem:[#allocation0] sm:%s577]
    %v579 = vpack.c.bf16 0.0, %v578
    %s581 = ssub.s32 16, 1
    %582 = vst [vmem:[%s1] sm:%s581] %v579
    %s583 = scalar_lea.vmem [#allocation0], 8
    %v584 = vld [vmem:[%s583] sm:%s577]
    %v585 = vpack.c.bf16 0.0, %v584
    %s587 = ssub.s32 16, 1
    %s588 = scalar_lea.vmem %s1, 4
    %589 = vst [vmem:[%s588] sm:%s587] %v585
    %s590 = scalar_lea.vmem [#allocation0], 16
    %v591 = vld [vmem:[%s590] sm:%s577]
    %v592 = vpack.c.bf16 0.0, %v591
    %s594 = ssub.s32 16, 1
    %s595 = scalar_lea.vmem %s1, 8
    %596 = vst [vmem:[%s595] sm:%s594] %v592
    %s597 = scalar_lea.vmem [#allocation0], 24
    %v598 = vld [vmem:[%s597] sm:%s577]
    %v599 = vpack.c.bf16 0.0, %v598
    %s601 = ssub.s32 16, 1
    %s602 = scalar_lea.vmem %s1, 12
    %603 = vst [vmem:[%s602] sm:%s601] %v599
    %s604 = scalar_lea.vmem [#allocation0], 32
    %v605 = vld [vmem:[%s604] sm:%s577]
    %v606 = vpack.c.bf16 0.0, %v605
    %s608 = ssub.s32 16, 1
    %s609 = scalar_lea.vmem %s1, 16
    %610 = vst [vmem:[%s609] sm:%s608] %v606
    %s611 = scalar_lea.vmem [#allocation0], 40
    %v612 = vld [vmem:[%s611] sm:%s577]
    %v613 = vpack.c.bf16 0.0, %v612
    %s615 = ssub.s32 16, 1
    %s616 = scalar_lea.vmem %s1, 20
    %617 = vst [vmem:[%s616] sm:%s615] %v613
    %s618 = scalar_lea.vmem [#allocation0], 48
    %v619 = vld [vmem:[%s618] sm:%s577]
    %v620 = vpack.c.bf16 0.0, %v619
    %s622 = ssub.s32 16, 1
    %s623 = scalar_lea.vmem %s1, 24
    %624 = vst [vmem:[%s623] sm:%s622] %v620
    %s625 = scalar_lea.vmem [#allocation0], 56
    %v626 = vld [vmem:[%s625] sm:%s577]
    %v627 = vpack.c.bf16 0.0, %v626
    %s629 = ssub.s32 16, 1
    %s630 = scalar_lea.vmem %s1, 28
    %631 = vst [vmem:[%s630] sm:%s629] %v627
    %s632 = scalar_lea.vmem [#allocation0], 64
    %v633 = vld [vmem:[%s632] sm:%s577]
    %v634 = vpack.c.bf16 0.0, %v633
    %s636 = ssub.s32 16, 1
    %s637 = scalar_lea.vmem %s1, 32
    %638 = vst [vmem:[%s637] sm:%s636] %v634
    %s639 = scalar_lea.vmem [#allocation0], 72
    %v640 = vld [vmem:[%s639] sm:%s577]
    %v641 = vpack.c.bf16 0.0, %v640
    %s643 = ssub.s32 16, 1
    %s644 = scalar_lea.vmem %s1, 36
    %645 = vst [vmem:[%s644] sm:%s643] %v641
    %s646 = scalar_lea.vmem [#allocation0], 80
    %v647 = vld [vmem:[%s646] sm:%s577]
    %v648 = vpack.c.bf16 0.0, %v647
    %s650 = ssub.s32 16, 1
    %s651 = scalar_lea.vmem %s1, 40
    %652 = vst [vmem:[%s651] sm:%s650] %v648
    %s653 = scalar_lea.vmem [#allocation0], 88
    %v654 = vld [vmem:[%s653] sm:%s577]
    %v655 = vpack.c.bf16 0.0, %v654
    %s657 = ssub.s32 16, 1
    %s658 = scalar_lea.vmem %s1, 44
    %659 = vst [vmem:[%s658] sm:%s657] %v655
    %s660 = scalar_lea.vmem [#allocation0], 96
    %v661 = vld [vmem:[%s660] sm:%s577]
    %v662 = vpack.c.bf16 0.0, %v661
    %s664 = ssub.s32 16, 1
    %s665 = scalar_lea.vmem %s1, 48
    %666 = vst [vmem:[%s665] sm:%s664] %v662
    %s667 = scalar_lea.vmem [#allocation0], 104
    %v668 = vld [vmem:[%s667] sm:%s577]
    %v669 = vpack.c.bf16 0.0, %v668
    %s671 = ssub.s32 16, 1
    %s672 = scalar_lea.vmem %s1, 52
    %673 = vst [vmem:[%s672] sm:%s671] %v669
    %s674 = scalar_lea.vmem [#allocation0], 112
    %v675 = vld [vmem:[%s674] sm:%s577]
    %v676 = vpack.c.bf16 0.0, %v675
    %s678 = ssub.s32 16, 1
    %s679 = scalar_lea.vmem %s1, 56
    %680 = vst [vmem:[%s679] sm:%s678] %v676
    %s681 = scalar_lea.vmem [#allocation0], 120
    %v682 = vld [vmem:[%s681] sm:%s577]
    %v683 = vpack.c.bf16 0.0, %v682
    %s685 = ssub.s32 16, 1
    %s686 = scalar_lea.vmem %s1, 60
    %687 = vst [vmem:[%s686] sm:%s685] %v683
    %s688 = scalar_lea.vmem [#allocation0], 128
    %v689 = vld [vmem:[%s688] sm:%s577]
    %v690 = vpack.c.bf16 0.0, %v689
    %s692 = ssub.s32 16, 1
    %s693 = scalar_lea.vmem %s1, 64
    %694 = vst [vmem:[%s693] sm:%s692] %v690
    %s695 = scalar_lea.vmem [#allocation0], 136
    %v696 = vld [vmem:[%s695] sm:%s577]
    %v697 = vpack.c.bf16 0.0, %v696
    %s699 = ssub.s32 16, 1
    %s700 = scalar_lea.vmem %s1, 68
    %701 = vst [vmem:[%s700] sm:%s699] %v697
    %s702 = scalar_lea.vmem [#allocation0], 144
    %v703 = vld [vmem:[%s702] sm:%s577]
    %v704 = vpack.c.bf16 0.0, %v703
    %s706 = ssub.s32 16, 1
    %s707 = scalar_lea.vmem %s1, 72
    %708 = vst [vmem:[%s707] sm:%s706] %v704
    %s709 = scalar_lea.vmem [#allocation0], 152
    %v710 = vld [vmem:[%s709] sm:%s577]
    %v711 = vpack.c.bf16 0.0, %v710
    %s713 = ssub.s32 16, 1
    %s714 = scalar_lea.vmem %s1, 76
    %715 = vst [vmem:[%s714] sm:%s713] %v711
    %s716 = scalar_lea.vmem [#allocation0], 160
    %v717 = vld [vmem:[%s716] sm:%s577]
    %v718 = vpack.c.bf16 0.0, %v717
    %s720 = ssub.s32 16, 1
    %s721 = scalar_lea.vmem %s1, 80
    %722 = vst [vmem:[%s721] sm:%s720] %v718
    %s723 = scalar_lea.vmem [#allocation0], 168
    %v724 = vld [vmem:[%s723] sm:%s577]
    %v725 = vpack.c.bf16 0.0, %v724
    %s727 = ssub.s32 16, 1
    %s728 = scalar_lea.vmem %s1, 84
    %729 = vst [vmem:[%s728] sm:%s727] %v725
    %s730 = scalar_lea.vmem [#allocation0], 176
    %v731 = vld [vmem:[%s730] sm:%s577]
    %v732 = vpack.c.bf16 0.0, %v731
    %s734 = ssub.s32 16, 1
    %s735 = scalar_lea.vmem %s1, 88
    %736 = vst [vmem:[%s735] sm:%s734] %v732
    %s737 = scalar_lea.vmem [#allocation0], 184
    %v738 = vld [vmem:[%s737] sm:%s577]
    %v739 = vpack.c.bf16 0.0, %v738
    %s741 = ssub.s32 16, 1
    %s742 = scalar_lea.vmem %s1, 92
    %743 = vst [vmem:[%s742] sm:%s741] %v739

// kernel: msmrfnet_forward.1
$region0: #{msmrfnet_forward.1}
  #allocation0 [shape = 'u32[]', space=smem, size = 0x4, offset = 0x4, fixed_abs, tag = 'smem constant byte address 0x4 - core index']
  #allocation1 [shape = 'u32[72,128]{1,0:T(1,128)}', space=vmem, size = 0x9000, scoped, tag = 'internal scratch']
  %s0 = inlined_call_operand.vmem [shape: bf16[3,32,2048], index: 0, kind: input, shape index: {}]
  %s1 = inlined_call_operand.vmem [shape: bf16[3,32,32], index: 1, kind: input, shape index: {}]
  %s2 = inlined_call_operand.vmem [shape: f32[3,32,1], index: 2, kind: input, shape index: {}]
  %s3 = inlined_call_operand.vmem [shape: f32[3,32,1], index: 3, kind: input, shape index: {}]
  %s4 = inlined_call_operand.vmem [shape: f32[3], index: 4, kind: input, shape index: {}]
  %s5 = inlined_call_operand.vmem [shape: f32[3,1,2048], index: 5, kind: output, shape index: {}]
  %s6 = sld [smem:[#allocation0]]
  $region80: #{msmrfnet_forward.1} parent=0
    _
  %s8 = ssub.s32 1, %s6
  %s9 = scalar_select 0, %s8, %s6
  $region1: #{msmrfnet_forward.1} parent=0
    #allocation2 [shape = 'u8[131072]{0}', space=vmem, size = 0x20000, scoped, tag = 'input window, operand 0']
    #allocation3 [shape = 'u8[512]{0}', space=smem, size = 0x200, scoped, tag = 'input window, operand 4, single buffered']
    #allocation4 [shape = 's32[2]{0}', space=sflag, size = 0x8, scoped, tag = 'scoped memory for msmrfnet_forward.1']
    %10 = vsyncpa [#allocation4], 0
    loop: start=0, step=1, limit=8
    $region2: #{msmrfnet_forward.1} parent=1 // loop_pre_header
      _
    $region3: #{msmrfnet_forward.1} parent=1 // loop_header
      %s12 = sphi 0, %s16
      %p13 = scmp.ge.s32.totalorder %s12, 8
      %s19 = sphi 0, %s31
      %s20 = sphi 0, %s27
      %s21 = sphi 0, %s19
      %s22 = sphi 0, %s20
      %s23 = sphi 0, %s21
      %s24 = sphi 0, %s22
      %s36 = sphi 0, %s38
      %s39 = sphi 0, %s36
      %s40 = sphi 0, %s39
      %s56 = sphi 0, %s40
      %s62 = sphi 0, %s64
      %s65 = sphi 0, %s62
      %s66 = sphi 0, %s65
      %s82 = sphi 0, %s66
      %s88 = sphi 0, %s90
      %s91 = sphi 0, %s88
      %s92 = sphi 0, %s91
      %s108 = sphi 0, %s92
      %s114 = sphi 0, %s116
      %s117 = sphi 0, %s114
      %s118 = sphi 0, %s117
      %s134 = sphi 0, %s118
      %s138 = sphi 0, %s138
      %s140 = sphi 0, %s138
      %s141 = sphi 0, %s140
      %s155 = sphi 0, %s141
      %s163 = sphi 0, %s165
      %s166 = sphi 0, %s163
      %s167 = sphi 0, %s166
      %s183 = sphi 0, %s167
    $region4: #{msmrfnet_forward.1} parent=1 // loop_header_branch
      %15 = sbr.rel (%p13) target = $region8
    $region5: #{msmrfnet_forward.1} parent=1 // loop_body
      %s17 = ssub.s32 %s12, 1
      %s18 = ssub.s32 %s12, 2
      %s25 = sadd.s32 1, %s20
      %p26 = scmp.ge.s32.totalorder %s25, 2
      %s27 = scalar_select %p26, 0, %s25
      %s28 = sadd.s32 1, %s19
      %s29 = scalar_select %p26, %s28, %s19
      %p30 = scmp.ge.s32.totalorder %s29, 3
      %s31 = scalar_select %p30, 0, %s29
      %s32 = ssub.s32 %s19, %s31
      %s33 = ssub.s32 %s20, %s27
      %s34 = sor.u32 %s32, %s33
      %p35 = scmp.eq.s32.totalorder %s34, 0
      %s37 = sadd.s32 %s36, 1
      %s38 = scalar_select %p35, %s36, %s37
      %p41 = pneg %p35
      %p42 = scmp.eq.s32.totalorder %s12, 5
      %p43 = por %p41, %p42
      %p44 = scmp.ne.s32.totalorder %s36, %s39
      %p45 = scmp.eq.s32.totalorder %s12, 0
      %p46 = por %p44, %p45
      %p47 = scmp.ne.s32.totalorder %s36, %s39
      %p48 = scmp.eq.s32.totalorder %s17, 5
      %p49 = por %p47, %p48
      %p50 = scmp.ne.s32.totalorder %s39, %s40
      %p51 = scmp.eq.s32.totalorder %s17, 0
      %p52 = por %p50, %p51
      %p53 = scmp.ne.s32.totalorder %s39, %s40
      %p54 = scmp.eq.s32.totalorder %s18, 5
      %p55 = por %p53, %p54
      %p57 = scmp.ne.s32.totalorder %s40, %s56
      %p58 = scmp.eq.s32.totalorder %s18, 0
      %p59 = por %p57, %p58
      %s60 = ssub.s32 %s19, %s31
      %p61 = scmp.eq.s32.totalorder %s60, 0
      %s63 = sadd.s32 %s62, 1
      %s64 = scalar_select %p61, %s62, %s63
      %p67 = pneg %p61
      %p68 = scmp.eq.s32.totalorder %s12, 5
      %p69 = por %p67, %p68
      %p70 = scmp.ne.s32.totalorder %s62, %s65
      %p71 = scmp.eq.s32.totalorder %s12, 0
      %p72 = por %p70, %p71
      %p73 = scmp.ne.s32.totalorder %s62, %s65
      %p74 = scmp.eq.s32.totalorder %s17, 5
      %p75 = por %p73, %p74
      %p76 = scmp.ne.s32.totalorder %s65, %s66
      %p77 = scmp.eq.s32.totalorder %s17, 0
      %p78 = por %p76, %p77
      %p79 = scmp.ne.s32.totalorder %s65, %s66
      %p80 = scmp.eq.s32.totalorder %s18, 5
      %p81 = por %p79, %p80
      %p83 = scmp.ne.s32.totalorder %s66, %s82
      %p84 = scmp.eq.s32.totalorder %s18, 0
      %p85 = por %p83, %p84
      %s86 = ssub.s32 %s19, %s31
      %p87 = scmp.eq.s32.totalorder %s86, 0
      %s89 = sadd.s32 %s88, 1
      %s90 = scalar_select %p87, %s88, %s89
      %p93 = pneg %p87
      %p94 = scmp.eq.s32.totalorder %s12, 5
      %p95 = por %p93, %p94
      %p96 = scmp.ne.s32.totalorder %s88, %s91
      %p97 = scmp.eq.s32.totalorder %s12, 0
      %p98 = por %p96, %p97
      %p99 = scmp.ne.s32.totalorder %s88, %s91
      %p100 = scmp.eq.s32.totalorder %s17, 5
      %p101 = por %p99, %p100
      %p102 = scmp.ne.s32.totalorder %s91, %s92
      %p103 = scmp.eq.s32.totalorder %s17, 0
      %p104 = por %p102, %p103
      %p105 = scmp.ne.s32.totalorder %s91, %s92
      %p106 = scmp.eq.s32.totalorder %s18, 5
      %p107 = por %p105, %p106
      %p109 = scmp.ne.s32.totalorder %s92, %s108
      %p110 = scmp.eq.s32.totalorder %s18, 0
      %p111 = por %p109, %p110
      %s112 = ssub.s32 %s19, %s31
      %p113 = scmp.eq.s32.totalorder %s112, 0
      %s115 = sadd.s32 %s114, 1
      %s116 = scalar_select %p113, %s114, %s115
      %p119 = pneg %p113
      %p120 = scmp.eq.s32.totalorder %s12, 5
      %p121 = por %p119, %p120
      %p122 = scmp.ne.s32.totalorder %s114, %s117
      %p123 = scmp.eq.s32.totalorder %s12, 0
      %p124 = por %p122, %p123
      %p125 = scmp.ne.s32.totalorder %s114, %s117
      %p126 = scmp.eq.s32.totalorder %s17, 5
      %p127 = por %p125, %p126
      %p128 = scmp.ne.s32.totalorder %s117, %s118
      %p129 = scmp.eq.s32.totalorder %s17, 0
      %p130 = por %p128, %p129
      %p131 = scmp.ne.s32.totalorder %s117, %s118
      %p132 = scmp.eq.s32.totalorder %s18, 5
      %p133 = por %p131, %p132
      %p135 = scmp.ne.s32.totalorder %s118, %s134
      %p136 = scmp.eq.s32.totalorder %s18, 0
      %p137 = por %p135, %p136
      %s139 = sadd.s32 %s138, 1
      %p142 = scmp.eq.s32.totalorder %s12, 5
      %p143 = scmp.ne.s32.totalorder %s138, %s140
      %p144 = scmp.eq.s32.totalorder %s12, 0
      %p145 = por %p143, %p144
      %p146 = scmp.ne.s32.totalorder %s138, %s140
      %p147 = scmp.eq.s32.totalorder %s17, 5
      %p148 = por %p146, %p147
      %p149 = scmp.ne.s32.totalorder %s140, %s141
      %p150 = scmp.eq.s32.totalorder %s17, 0
      %p151 = por %p149, %p150
      %p152 = scmp.ne.s32.totalorder %s140, %s141
      %p153 = scmp.eq.s32.totalorder %s18, 5
      %p154 = por %p152, %p153
      %p156 = scmp.ne.s32.totalorder %s141, %s155
      %p157 = scmp.eq.s32.totalorder %s18, 0
      %p158 = por %p156, %p157
      %s159 = ssub.s32 %s19, %s31
      %s160 = ssub.s32 %s20, %s27
      %s161 = sor.u32 %s159, %s160
      %p162 = scmp.eq.s32.totalorder %s161, 0
      %s164 = sadd.s32 %s163, 1
      %s165 = scalar_select %p162, %s163, %s164
      %p168 = pneg %p162
      %p169 = scmp.eq.s32.totalorder %s12, 5
      %p170 = por %p168, %p169
      %p171 = scmp.ne.s32.totalorder %s163, %s166
      %p172 = scmp.eq.s32.totalorder %s12, 0
      %p173 = por %p171, %p172
      %p174 = scmp.ne.s32.totalorder %s163, %s166
      %p175 = scmp.eq.s32.totalorder %s17, 5
      %p176 = por %p174, %p175
      %p177 = scmp.ne.s32.totalorder %s166, %s167
      %p178 = scmp.eq.s32.totalorder %s17, 0
      %p179 = por %p177, %p178
      %p180 = scmp.ne.s32.totalorder %s166, %s167
      %p181 = scmp.eq.s32.totalorder %s18, 5
      %p182 = por %p180, %p181
      %p184 = scmp.ne.s32.totalorder %s167, %s183
      %p185 = scmp.eq.s32.totalorder %s18, 0
      %p186 = por %p184, %p185
      %p187 = scmp.le.s32.totalorder 1, %s12
      %p188 = scmp.lt.s32.totalorder %s12, 7
      %p189 = pnand %p187, %p188
      %p190 = pneg %p189
      // Predicated region
      $region9: #{msmrfnet_forward.1} parent=5 // pred_check
        _
      $region10: #{msmrfnet_forward.1} parent=5 // pred_check_branch
        %192 = sbr.rel (%p189) target = $region12
      $region11: #{msmrfnet_forward.1} parent=5 // pred_region
        %s193 = ssub.s32 %s12, 1
        // Predicated region
        $region13: #{msmrfnet_forward.1} parent=11 // pred_check
          %p194 = pneg %p151
        $region14: #{msmrfnet_forward.1} parent=11 // pred_check_branch
          %196 = sbr.rel (%p194) target = $region16
        $region15: #{msmrfnet_forward.1} parent=11 // pred_region
          %198 = vsyncadd [#allocation4], 0
          %s200 = sshll.u32 %s4, 4
          %s201 = int_to_ptr.vmem [resolvable:$true] %s200
          %203 = dma.vmem_to_smem %s201, 16, [#allocation3], [#allocation4]
        $region16: #{msmrfnet_forward.1} parent=11 // pred_fallthru
          _
      $region12: #{msmrfnet_forward.1} parent=5 // pred_fallthru
        _
      %p204 = scmp.lt.s32.totalorder %s12, 6
      // Predicated region
      $region17: #{msmrfnet_forward.1} parent=5 // pred_check
        %p205 = pneg %p204
      $region18: #{msmrfnet_forward.1} parent=5 // pred_check_branch
        %207 = sbr.rel (%p205) target = $region20
      $region19: #{msmrfnet_forward.1} parent=5 // pred_region
        // Predicated region
        $region21: #{msmrfnet_forward.1} parent=19 // pred_check
          %p208 = pneg %p46
        $region22: #{msmrfnet_forward.1} parent=19 // pred_check_branch
          %210 = sbr.rel (%p208) target = $region24
        $region23: #{msmrfnet_forward.1} parent=19 // pred_region
          %s211 = sand.u32 %s36, 1
          %s212 = sand.u32 %s36, 1
          %s213 = smul.addr %s212, 128
          %s214 = scalar_lea.vmem [#allocation2], %s213
          %s215 = smul.u32 8, %s20
          %s216 = smul.addr %s19, 64
          %s217 = sadd.s32 %s215, %s216
          %s218 = smul.addr %s217, 4
          %s219 = scalar_lea.vmem %s0, %s218
          // Predicated region
          $region25: #{msmrfnet_forward.1} parent=23 // pred_check
            _
          $region26: #{msmrfnet_forward.1} parent=23 // pred_check_branch
            %221 = sbr.rel (0) target = $region28
          $region27: #{msmrfnet_forward.1} parent=23 // pred_region
            // Predicated region
            $region29: #{msmrfnet_forward.1} parent=27 // pred_check
              _
            $region30: #{msmrfnet_forward.1} parent=27 // pred_check_branch
              %223 = sbr.rel (0) target = $region32
            $region31: #{msmrfnet_forward.1} parent=27 // pred_region
              loop: start=0, step=1, limit=1
              $region33: #{msmrfnet_forward.1} parent=31 // loop_pre_header
                _
              $region34: #{msmrfnet_forward.1} parent=31 // loop_header
                %s225 = sphi 0, %s229
                %p226 = scmp.ge.s32.totalorder %s225, 1
                %s230 = sphi %s219, %s219
                %s231 = sphi %s214, %s214
              $region35: #{msmrfnet_forward.1} parent=31 // loop_header_branch
                %228 = sbr.rel (%p226) target = $region39
              $region36: #{msmrfnet_forward.1} parent=31 // loop_body
                %v232 = vld [vmem:[%s230] sm:$0xff]
                %233 = vst [vmem:[%s231] sm:$0xff] %v232
                %v234 = vld [vmem:[%s230 + $0x8] sm:$0xff]
                %235 = vst [vmem:[%s231 + $0x8] sm:$0xff] %v234
                %v236 = vld [vmem:[%s230 + $0x10] sm:$0xff]
                %237 = vst [vmem:[%s231 + $0x10] sm:$0xff] %v236
                %v238 = vld [vmem:[%s230 + $0x18] sm:$0xff]
                %239 = vst [vmem:[%s231 + $0x18] sm:$0xff] %v238
                %v240 = vld [vmem:[%s230 + $0x40] sm:$0xff]
                %241 = vst [vmem:[%s231 + $0x20] sm:$0xff] %v240
                %v242 = vld [vmem:[%s230 + $0x48] sm:$0xff]
                %243 = vst [vmem:[%s231 + $0x28] sm:$0xff] %v242
                %v244 = vld [vmem:[%s230 + $0x50] sm:$0xff]
                %245 = vst [vmem:[%s231 + $0x30] sm:$0xff] %v244
                %v246 = vld [vmem:[%s230 + $0x58] sm:$0xff]
                %247 = vst [vmem:[%s231 + $0x38] sm:$0xff] %v246
                %v248 = vld [vmem:[%s230 + $0x80] sm:$0xff]
                %249 = vst [vmem:[%s231 + $0x40] sm:$0xff] %v248
                %v250 = vld [vmem:[%s230 + $0x88] sm:$0xff]
                %251 = vst [vmem:[%s231 + $0x48] sm:$0xff] %v250
                %v252 = vld [vmem:[%s230 + $0x90] sm:$0xff]
                %253 = vst [vmem:[%s231 + $0x50] sm:$0xff] %v252
                %v254 = vld [vmem:[%s230 + $0x98] sm:$0xff]
                %255 = vst [vmem:[%s231 + $0x58] sm:$0xff] %v254
                %v256 = vld [vmem:[%s230 + $0xc0] sm:$0xff]
                %257 = vst [vmem:[%s231 + $0x60] sm:$0xff] %v256
                %v258 = vld [vmem:[%s230 + $0xc8] sm:$0xff]
                %259 = vst [vmem:[%s231 + $0x68] sm:$0xff] %v258
                %v260 = vld [vmem:[%s230 + $0xd0] sm:$0xff]
                %261 = vst [vmem:[%s231 + $0x70] sm:$0xff] %v260
                %v262 = vld [vmem:[%s230 + $0xd8] sm:$0xff]
                %263 = vst [vmem:[%s231 + $0x78] sm:$0xff] %v262
              $region37: #{msmrfnet_forward.1} parent=31 // loop_footer
                %s229 = sadd.s32 1, %s225
              $region38: #{msmrfnet_forward.1} parent=31 // loop_footer_branch
                %224 = sbr.rel target = $region34
              $region39: #{msmrfnet_forward.1} parent=31 // loop_exit
                _
            $region32: #{msmrfnet_forward.1} parent=27 // pred_fallthru
              _
            // Predicated region
            $region40: #{msmrfnet_forward.1} parent=27 // pred_check
              _
            $region41: #{msmrfnet_forward.1} parent=27 // pred_check_branch
              %265 = sbr.rel target = $region43
            $region42: #{msmrfnet_forward.1} parent=27 // pred_region
              _
            $region43: #{msmrfnet_forward.1} parent=27 // pred_fallthru
              _
          $region28: #{msmrfnet_forward.1} parent=23 // pred_fallthru
            _
          %266 = vnop
        $region24: #{msmrfnet_forward.1} parent=19 // pred_fallthru
          _
        // Predicated region
        $region44: #{msmrfnet_forward.1} parent=19 // pred_check
          %p267 = pneg %p72
        $region45: #{msmrfnet_forward.1} parent=19 // pred_check_branch
          %269 = sbr.rel (%p267) target = $region47
        $region46: #{msmrfnet_forward.1} parent=19 // pred_region
          %p270 = scmp.lt.s32.totalorder %s19, 2
          %s271 = scalar_select %p270, %s19, 2
          %s272 = smul.addr %s271, 4
          %s273 = smul.addr %s272, 4
          %s274 = scalar_lea.vmem %s1, %s273
        $region47: #{msmrfnet_forward.1} parent=19 // pred_fallthru
          _
        // Predicated region
        $region48: #{msmrfnet_forward.1} parent=19 // pred_check
          %p275 = pneg %p98
        $region49: #{msmrfnet_forward.1} parent=19 // pred_check_branch
          %277 = sbr.rel (%p275) target = $region51
        $region50: #{msmrfnet_forward.1} parent=19 // pred_region
          %p278 = scmp.lt.s32.totalorder %s19, 2
          %s279 = scalar_select %p278, %s19, 2
          %s280 = smul.addr %s279, 4
          %s281 = smul.addr %s280, 8
          %s282 = scalar_lea.vmem %s2, %s281
        $region51: #{msmrfnet_forward.1} parent=19 // pred_fallthru
          _
        // Predicated region
        $region52: #{msmrfnet_forward.1} parent=19 // pred_check
          %p283 = pneg %p124
        $region53: #{msmrfnet_forward.1} parent=19 // pred_check_branch
          %285 = sbr.rel (%p283) target = $region55
        $region54: #{msmrfnet_forward.1} parent=19 // pred_region
          %p286 = scmp.lt.s32.totalorder %s19, 2
          %s287 = scalar_select %p286, %s19, 2
          %s288 = smul.addr %s287, 4
          %s289 = smul.addr %s288, 8
          %s290 = scalar_lea.vmem %s3, %s289
        $region55: #{msmrfnet_forward.1} parent=19 // pred_fallthru
          _
      $region20: #{msmrfnet_forward.1} parent=5 // pred_fallthru
        _
      %p291 = scmp.le.s32.totalorder 1, %s12
      %p292 = scmp.lt.s32.totalorder %s12, 7
      %p293 = pnand %p291, %p292
      %p294 = pneg %p293
      // Predicated region
      $region56: #{msmrfnet_forward.1} parent=5 // pred_check
        _
      $region57: #{msmrfnet_forward.1} parent=5 // pred_check_branch
        %296 = sbr.rel (%p293) target = $region59
      $region58: #{msmrfnet_forward.1} parent=5 // pred_region
        %s297 = ssub.s32 %s12, 1
        %s298 = sand.u32 %s39, 1
        %s299 = sand.u32 %s39, 1
        %s300 = smul.addr %s299, 128
        %s301 = scalar_lea.vmem [#allocation2], %s300
        // Predicated region
        $region60: #{msmrfnet_forward.1} parent=58 // pred_check
          %p302 = pneg %p52
        $region61: #{msmrfnet_forward.1} parent=58 // pred_check_branch
          %304 = sbr.rel (%p302) target = $region63
        $region62: #{msmrfnet_forward.1} parent=58 // pred_region
          _
        $region63: #{msmrfnet_forward.1} parent=58 // pred_fallthru
          _
        // Predicated region
        $region64: #{msmrfnet_forward.1} parent=58 // pred_check
          %p305 = pneg %p151
        $region65: #{msmrfnet_forward.1} parent=58 // pred_check_branch
          %307 = sbr.rel (%p305) target = $region67
        $region66: #{msmrfnet_forward.1} parent=58 // pred_region
          %309 = dma.done [#allocation4], 16
        $region67: #{msmrfnet_forward.1} parent=58 // pred_fallthru
          _
        %310 = sfence
        %s311 = sand.u32 %s39, 1
        %s312 = sand.u32 %s39, 1
        %s313 = smul.addr %s312, 128
        %s314 = scalar_lea.vmem [#allocation2], %s313
        %p315 = pneg %p52
        %p316 = pneg %p49
        %p317 = scmp.lt.s32.totalorder %s21, 2
        %s318 = scalar_select %p317, %s21, 2
        %s319 = smul.addr %s318, 4
        %s320 = smul.addr %s319, 4
        %s321 = scalar_lea.vmem %s1, %s320
        %p322 = pneg %p78
        %p323 = pneg %p75
        %p324 = scmp.lt.s32.totalorder %s21, 2
        %s325 = scalar_select %p324, %s21, 2
        %s326 = smul.addr %s325, 4
        %s327 = smul.addr %s326, 8
        %s328 = scalar_lea.vmem %s2, %s327
        %p329 = pneg %p104
        %p330 = pneg %p101
        %p331 = scmp.lt.s32.totalorder %s21, 2
        %s332 = scalar_select %p331, %s21, 2
        %s333 = smul.addr %s332, 4
        %s334 = smul.addr %s333, 8
        %s335 = scalar_lea.vmem %s3, %s334
        %p336 = pneg %p130
        %p337 = pneg %p127
        %p338 = pneg %p151
        %p339 = pneg %p148
        %p340 = pneg %p179
        %p341 = pneg %p176
        %s342 = smul.u32 8, %s22
        %p343 = scmp.lt.s32.totalorder %s21, 2
        %s344 = scalar_select %p343, %s21, 2
        %p345 = scmp.lt.s32.totalorder %s342, 15
        %s346 = scalar_select %p345, %s342, 15
        %s347 = smul.addr %s344, 16
        %s348 = sadd.s32 %s346, %s347
        %s349 = scalar_lea.vmem %s5, %s348
        %s350 = smul.u32 8, %s22
        %p351 = scmp.lt.s32.totalorder %s21, 2
        %s352 = scalar_select %p351, %s21, 2
        %s353 = smul.addr %s352, 4
        %s354 = smul.addr %s353, 4
        %s355 = scalar_lea.vmem %s1, %s354
        %p356 = scmp.lt.s32.totalorder %s21, 2
        %s357 = scalar_select %p356, %s21, 2
        %s358 = smul.addr %s357, 4
        %s359 = smul.addr %s358, 8
        %s360 = scalar_lea.vmem %s2, %s359
        %p361 = scmp.lt.s32.totalorder %s21, 2
        %s362 = scalar_select %p361, %s21, 2
        %s363 = smul.addr %s362, 4
        %s364 = smul.addr %s363, 8
        %s365 = scalar_lea.vmem %s3, %s364
        %s366 = smul.u32 8, %s22
        %p367 = scmp.lt.s32.totalorder %s21, 2
        %s368 = scalar_select %p367, %s21, 2
        %p369 = scmp.lt.s32.totalorder %s366, 15
        %s370 = scalar_select %p369, %s366, 15
        %s371 = smul.addr %s368, 16
        %s372 = sadd.s32 %s370, %s371
        %s373 = scalar_lea.vmem %s5, %s372
        %s374 = smul.u32 8, %s22
        %v376 = vld [vmem:[%s355] sm:$0xf]
        %v377 = vld [vmem:[%s355 + $0x4] sm:$0xf]
        %v378 = vld [vmem:[%s355 + $0x8] sm:$0xf]
        %v379 = vld [vmem:[%s355 + $0xc] sm:$0xf]
        %v380 = vld [vmem:[%s301] sm:$0xff]
        %v381 = vld [vmem:[%s301 + $0x8] sm:$0xff]
        %v382 = vld [vmem:[%s301 + $0x10] sm:$0xff]
        %v383 = vld [vmem:[%s301 + $0x18] sm:$0xff]
        %v384 = vld [vmem:[%s301 + $0x20] sm:$0xff]
        %v385 = vld [vmem:[%s301 + $0x28] sm:$0xff]
        %v386 = vld [vmem:[%s301 + $0x30] sm:$0xff]
        %v387 = vld [vmem:[%s301 + $0x38] sm:$0xff]
        %v388 = vld [vmem:[%s301 + $0x40] sm:$0xff]
        %v389 = vld [vmem:[%s301 + $0x48] sm:$0xff]
        %v390 = vld [vmem:[%s301 + $0x50] sm:$0xff]
        %v391 = vld [vmem:[%s301 + $0x58] sm:$0xff]
        %v392 = vld [vmem:[%s301 + $0x60] sm:$0xff]
        %v393 = vld [vmem:[%s301 + $0x68] sm:$0xff]
        %v394 = vld [vmem:[%s301 + $0x70] sm:$0xff]
        %v395 = vld [vmem:[%s301 + $0x78] sm:$0xff]
        %v396 = vld [vmem:[%s360] sm:$0xff]
        %v397 = vld [vmem:[%s360 + $0x8] sm:$0xff]
        %v398 = vld [vmem:[%s360 + $0x10] sm:$0xff]
        %v399 = vld [vmem:[%s360 + $0x18] sm:$0xff]
        %401 = vset.pattern.permute.xlu0 0
        %402 = vperm.xlu0 %401, %v396
        %v403 = vpop.permute.xlu0 %402
        %406 = vset.pattern.permute.xlu0 0
        %407 = vperm.xlu0 %406, %v397
        %v408 = vpop.permute.xlu0 %407
        %411 = vset.pattern.permute.xlu0 0
        %412 = vperm.xlu0 %411, %v398
        %v413 = vpop.permute.xlu0 %412
        %416 = vset.pattern.permute.xlu0 0
        %417 = vperm.xlu0 %416, %v399
        %v418 = vpop.permute.xlu0 %417
        %v424 = vunpack.c.l.b16 %v376
        %v425 = vunpack.c.l.b16 %v377
        %v426 = vunpack.c.l.b16 %v378
        %v427 = vunpack.c.l.b16 %v379
        %v428 = vpack.c.b16 %v425, %v424
        %v429 = vpack.c.b16 %v427, %v426
        %v446 = vunpack.c.l.b16 %v380
        %v447 = vunpack.c.h.b16 %v380
        %v448 = vunpack.c.l.b16 %v381
        %v449 = vunpack.c.h.b16 %v381
        %v450 = vunpack.c.l.b16 %v382
        %v451 = vunpack.c.h.b16 %v382
        %v452 = vunpack.c.l.b16 %v383
        %v453 = vunpack.c.h.b16 %v383
        %v454 = vunpack.c.l.b16 %v384
        %v455 = vunpack.c.h.b16 %v384
        %v456 = vunpack.c.l.b16 %v385
        %v457 = vunpack.c.h.b16 %v385
        %v458 = vunpack.c.l.b16 %v386
        %v459 = vunpack.c.h.b16 %v386
        %v460 = vunpack.c.l.b16 %v387
        %v461 = vunpack.c.h.b16 %v387
        %v462 = vunpack.c.l.b16 %v388
        %v463 = vunpack.c.h.b16 %v388
        %v464 = vunpack.c.l.b16 %v389
        %v465 = vunpack.c.h.b16 %v389
        %v466 = vunpack.c.l.b16 %v390
        %v467 = vunpack.c.h.b16 %v390
        %v468 = vunpack.c.l.b16 %v391
        %v469 = vunpack.c.h.b16 %v391
        %v470 = vunpack.c.l.b16 %v392
        %v471 = vunpack.c.h.b16 %v392
        %v472 = vunpack.c.l.b16 %v393
        %v473 = vunpack.c.h.b16 %v393
        %v474 = vunpack.c.l.b16 %v394
        %v475 = vunpack.c.h.b16 %v394
        %v476 = vunpack.c.l.b16 %v395
        %v477 = vunpack.c.h.b16 %v395
        %v478 = vpack.c.b16 %v454, %v446
        %v479 = vpack.c.b16 %v455, %v447
        %v480 = vpack.c.b16 %v456, %v448
        %v481 = vpack.c.b16 %v457, %v449
        %v482 = vpack.c.b16 %v458, %v450
        %v483 = vpack.c.b16 %v459, %v451
        %v484 = vpack.c.b16 %v460, %v452
        %v485 = vpack.c.b16 %v461, %v453
        %v486 = vpack.c.b16 %v470, %v462
        %v487 = vpack.c.b16 %v471, %v463
        %v488 = vpack.c.b16 %v472, %v464
        %v489 = vpack.c.b16 %v473, %v465
        %v490 = vpack.c.b16 %v474, %v466
        %v491 = vpack.c.b16 %v475, %v467
        %v492 = vpack.c.b16 %v476, %v468
        %v493 = vpack.c.b16 %v477, %v469
        %vm510 = vcmask 261120
        %v512 = vsel %vm510, %v428, 0
        %v515 = vsel %vm510, %v429, 0
        %517 = vmatpush.bf16.msra.mxu0 0
        %518 = vmatpush.bf16.msra.mxu0 0
        %519 = vmatpush.bf16.msra.mxu0 0
        %520 = vmatpush.bf16.msra.mxu0 0
        %521 = vmatpush.bf16.msra.mxu0 0
        %522 = vmatpush.bf16.msra.mxu0 0
        %523 = vmatpush.bf16.msra.mxu0 %v486
        %524 = vmatpush.bf16.msra.mxu0 %v478
        %525 = vmatmul.bf16.gmra.mxu0 %v512
        %v526 = vpop.f32.mrf.mxu0
        %v527 = vadd.f32 %v403, %v526
        %v528 = vpop.f32.mrf.mxu0
        %v529 = vadd.f32 %v408, %v528
        %530 = vmatmul.bf16.gmra.mxu0 %v515
        %v531 = vpop.f32.mrf.mxu0
        %v532 = vadd.f32 %v413, %v531
        %v533 = vpop.f32.mrf.mxu0
        %v534 = vadd.f32 %v418, %v533
        %535 = vdwg.mxu0
        %536 = vmatpush.bf16.msra.mxu0 0
        %537 = vmatpush.bf16.msra.mxu0 0
        %538 = vmatpush.bf16.msra.mxu0 0
        %539 = vmatpush.bf16.msra.mxu0 0
        %540 = vmatpush.bf16.msra.mxu0 0
        %541 = vmatpush.bf16.msra.mxu0 0
        %542 = vmatpush.bf16.msra.mxu0 %v487
        %543 = vmatpush.bf16.msra.mxu0 %v479
        %544 = vmatmul.bf16.gmra.mxu0 %v512
        %v545 = vpop.f32.mrf.mxu0
        %v546 = vadd.f32 %v403, %v545
        %v547 = vpop.f32.mrf.mxu0
        %v548 = vadd.f32 %v408, %v547
        %549 = vmatmul.bf16.gmra.mxu0 %v515
        %v550 = vpop.f32.mrf.mxu0
        %v551 = vadd.f32 %v413, %v550
        %v552 = vpop.f32.mrf.mxu0
        %v553 = vadd.f32 %v418, %v552
        %554 = vdwg.mxu0
        %555 = vmatpush.bf16.msra.mxu0 0
        %556 = vmatpush.bf16.msra.mxu0 0
        %557 = vmatpush.bf16.msra.mxu0 0
        %558 = vmatpush.bf16.msra.mxu0 0
        %559 = vmatpush.bf16.msra.mxu0 0
        %560 = vmatpush.bf16.msra.mxu0 0
        %561 = vmatpush.bf16.msra.mxu0 %v488
        %562 = vmatpush.bf16.msra.mxu0 %v480
        %563 = vmatmul.bf16.gmra.mxu0 %v512
        %v564 = vpop.f32.mrf.mxu0
        %v565 = vadd.f32 %v403, %v564
        %v566 = vpop.f32.mrf.mxu0
        %v567 = vadd.f32 %v408, %v566
        %568 = vmatmul.bf16.gmra.mxu0 %v515
        %v569 = vpop.f32.mrf.mxu0
        %v570 = vadd.f32 %v413, %v569
        %v571 = vpop.f32.mrf.mxu0
        %v572 = vadd.f32 %v418, %v571
        %573 = vdwg.mxu0
        %574 = vmatpush.bf16.msra.mxu0 0
        %575 = vmatpush.bf16.msra.mxu0 0
        %576 = vmatpush.bf16.msra.mxu0 0
        %577 = vmatpush.bf16.msra.mxu0 0
        %578 = vmatpush.bf16.msra.mxu0 0
        %579 = vmatpush.bf16.msra.mxu0 0
        %580 = vmatpush.bf16.msra.mxu0 %v489
        %581 = vmatpush.bf16.msra.mxu0 %v481
        %582 = vmatmul.bf16.gmra.mxu0 %v512
        %v583 = vpop.f32.mrf.mxu0
        %v584 = vadd.f32 %v403, %v583
        %v585 = vpop.f32.mrf.mxu0
        %v586 = vadd.f32 %v408, %v585
        %587 = vmatmul.bf16.gmra.mxu0 %v515
        %v588 = vpop.f32.mrf.mxu0
        %v589 = vadd.f32 %v413, %v588
        %v590 = vpop.f32.mrf.mxu0
        %v591 = vadd.f32 %v418, %v590
        %592 = vdwg.mxu0
        %593 = vmatpush.bf16.msra.mxu0 0
        %594 = vmatpush.bf16.msra.mxu0 0
        %595 = vmatpush.bf16.msra.mxu0 0
        %596 = vmatpush.bf16.msra.mxu0 0
        %597 = vmatpush.bf16.msra.mxu0 0
        %598 = vmatpush.bf16.msra.mxu0 0
        %599 = vmatpush.bf16.msra.mxu0 %v490
        %600 = vmatpush.bf16.msra.mxu0 %v482
        %601 = vmatmul.bf16.gmra.mxu0 %v512
        %v602 = vpop.f32.mrf.mxu0
        %v603 = vadd.f32 %v403, %v602
        %v604 = vpop.f32.mrf.mxu0
        %v605 = vadd.f32 %v408, %v604
        %606 = vmatmul.bf16.gmra.mxu0 %v515
        %v607 = vpop.f32.mrf.mxu0
        %v608 = vadd.f32 %v413, %v607
        %v609 = vpop.f32.mrf.mxu0
        %v610 = vadd.f32 %v418, %v609
        %611 = vdwg.mxu0
        %612 = vmatpush.bf16.msra.mxu0 0
        %613 = vmatpush.bf16.msra.mxu0 0
        %614 = vmatpush.bf16.msra.mxu0 0
        %615 = vmatpush.bf16.msra.mxu0 0
        %616 = vmatpush.bf16.msra.mxu0 0
        %617 = vmatpush.bf16.msra.mxu0 0
        %618 = vmatpush.bf16.msra.mxu0 %v491
        %619 = vmatpush.bf16.msra.mxu0 %v483
        %620 = vmatmul.bf16.gmra.mxu0 %v512
        %v621 = vpop.f32.mrf.mxu0
        %v622 = vadd.f32 %v403, %v621
        %v623 = vpop.f32.mrf.mxu0
        %v624 = vadd.f32 %v408, %v623
        %625 = vmatmul.bf16.gmra.mxu0 %v515
        %v626 = vpop.f32.mrf.mxu0
        %v627 = vadd.f32 %v413, %v626
        %v628 = vpop.f32.mrf.mxu0
        %v629 = vadd.f32 %v418, %v628
        %630 = vdwg.mxu0
        %631 = vmatpush.bf16.msra.mxu0 0
        %632 = vmatpush.bf16.msra.mxu0 0
        %633 = vmatpush.bf16.msra.mxu0 0
        %634 = vmatpush.bf16.msra.mxu0 0
        %635 = vmatpush.bf16.msra.mxu0 0
        %636 = vmatpush.bf16.msra.mxu0 0
        %637 = vmatpush.bf16.msra.mxu0 %v492
        %638 = vmatpush.bf16.msra.mxu0 %v484
        %639 = vmatmul.bf16.gmra.mxu0 %v512
        %v640 = vpop.f32.mrf.mxu0
        %v641 = vadd.f32 %v403, %v640
        %v642 = vpop.f32.mrf.mxu0
        %v643 = vadd.f32 %v408, %v642
        %644 = vmatmul.bf16.gmra.mxu0 %v515
        %v645 = vpop.f32.mrf.mxu0
        %v646 = vadd.f32 %v413, %v645
        %v647 = vpop.f32.mrf.mxu0
        %v648 = vadd.f32 %v418, %v647
        %649 = vdwg.mxu0
        %650 = vmatpush.bf16.msra.mxu0 0
        %651 = vmatpush.bf16.msra.mxu0 0
        %652 = vmatpush.bf16.msra.mxu0 0
        %653 = vmatpush.bf16.msra.mxu0 0
        %654 = vmatpush.bf16.msra.mxu0 0
        %655 = vmatpush.bf16.msra.mxu0 0
        %656 = vmatpush.bf16.msra.mxu0 %v493
        %657 = vmatpush.bf16.msra.mxu0 %v485
        %658 = vmatmul.bf16.gmra.mxu0 %v512
        %v659 = vpop.f32.mrf.mxu0
        %v660 = vadd.f32 %v403, %v659
        %v661 = vpop.f32.mrf.mxu0
        %v662 = vadd.f32 %v408, %v661
        %663 = vmatmul.bf16.gmra.mxu0 %v515
        %v664 = vpop.f32.mrf.mxu0
        %v665 = vadd.f32 %v413, %v664
        %v666 = vpop.f32.mrf.mxu0
        %v667 = vadd.f32 %v418, %v666
        %668 = vdwg.mxu0
        %v669 = vmax.f32 %v527, 0.0
        %v670 = vmax.f32 %v546, 0.0
        %v671 = vmax.f32 %v565, 0.0
        %v672 = vmax.f32 %v584, 0.0
        %v673 = vmax.f32 %v603, 0.0
        %v674 = vmax.f32 %v622, 0.0
        %v675 = vmax.f32 %v641, 0.0
        %v676 = vmax.f32 %v660, 0.0
        %v677 = vmax.f32 %v529, 0.0
        %v678 = vmax.f32 %v548, 0.0
        %v679 = vmax.f32 %v567, 0.0
        %v680 = vmax.f32 %v586, 0.0
        %v681 = vmax.f32 %v605, 0.0
        %v682 = vmax.f32 %v624, 0.0
        %v683 = vmax.f32 %v643, 0.0
        %v684 = vmax.f32 %v662, 0.0
        %v685 = vmax.f32 %v532, 0.0
        %v686 = vmax.f32 %v551, 0.0
        %v687 = vmax.f32 %v570, 0.0
        %v688 = vmax.f32 %v589, 0.0
        %v689 = vmax.f32 %v608, 0.0
        %v690 = vmax.f32 %v627, 0.0
        %v691 = vmax.f32 %v646, 0.0
        %v692 = vmax.f32 %v665, 0.0
        %v693 = vmax.f32 %v534, 0.0
        %v694 = vmax.f32 %v553, 0.0
        %v695 = vmax.f32 %v572, 0.0
        %v696 = vmax.f32 %v591, 0.0
        %v697 = vmax.f32 %v610, 0.0
        %v698 = vmax.f32 %v629, 0.0
        %v699 = vmax.f32 %v648, 0.0
        %v700 = vmax.f32 %v667, 0.0
        %v701 = vld [vmem:[%s365] sm:$0xff]
        %v702 = vld [vmem:[%s365 + $0x8] sm:$0xff]
        %v703 = vld [vmem:[%s365 + $0x10] sm:$0xff]
        %v704 = vld [vmem:[%s365 + $0x18] sm:$0xff]
        %706 = vset.pattern.permute.xlu0 0
        %707 = vperm.xlu0 %706, %v701
        %v708 = vpop.permute.xlu0 %707
        %711 = vset.pattern.permute.xlu0 0
        %712 = vperm.xlu0 %711, %v702
        %v713 = vpop.permute.xlu0 %712
        %716 = vset.pattern.permute.xlu0 0
        %717 = vperm.xlu0 %716, %v703
        %v718 = vpop.permute.xlu0 %717
        %721 = vset.pattern.permute.xlu0 0
        %722 = vperm.xlu0 %721, %v704
        %v723 = vpop.permute.xlu0 %722
        %v725 = vmul.f32 %v669, %v708
        %v726 = vmul.f32 %v670, %v708
        %v727 = vmul.f32 %v671, %v708
        %v728 = vmul.f32 %v672, %v708
        %v729 = vmul.f32 %v673, %v708
        %v730 = vmul.f32 %v674, %v708
        %v731 = vmul.f32 %v675, %v708
        %v732 = vmul.f32 %v676, %v708
        %v733 = vmul.f32 %v677, %v713
        %v734 = vmul.f32 %v678, %v713
        %v735 = vmul.f32 %v679, %v713
        %v736 = vmul.f32 %v680, %v713
        %v737 = vmul.f32 %v681, %v713
        %v738 = vmul.f32 %v682, %v713
        %v739 = vmul.f32 %v683, %v713
        %v740 = vmul.f32 %v684, %v713
        %v741 = vmul.f32 %v685, %v718
        %v742 = vmul.f32 %v686, %v718
        %v743 = vmul.f32 %v687, %v718
        %v744 = vmul.f32 %v688, %v718
        %v745 = vmul.f32 %v689, %v718
        %v746 = vmul.f32 %v690, %v718
        %v747 = vmul.f32 %v691, %v718
        %v748 = vmul.f32 %v692, %v718
        %v749 = vmul.f32 %v693, %v723
        %v750 = vmul.f32 %v694, %v723
        %v751 = vmul.f32 %v695, %v723
        %v752 = vmul.f32 %v696, %v723
        %v753 = vmul.f32 %v697, %v723
        %v754 = vmul.f32 %v698, %v723
        %v755 = vmul.f32 %v699, %v723
        %v756 = vmul.f32 %v700, %v723
        %v757 = vadd.f32 %v725, %v733
        %v758 = vadd.f32 %v757, %v741
        %v759 = vadd.f32 %v758, %v749
        %v760 = vrot.slane %v759, 4
        %v761 = vadd.f32 %v759, %v760
        %v762 = vrot.slane %v761, 2
        %v763 = vadd.f32 %v761, %v762
        %v764 = vrot.slane %v763, 1
        %v765 = vadd.f32 %v763, %v764
        %v766 = vadd.f32 %v726, %v734
        %v767 = vadd.f32 %v766, %v742
        %v768 = vadd.f32 %v767, %v750
        %v769 = vrot.slane %v768, 4
        %v770 = vadd.f32 %v768, %v769
        %v771 = vrot.slane %v770, 2
        %v772 = vadd.f32 %v770, %v771
        %v773 = vrot.slane %v772, 1
        %v774 = vadd.f32 %v772, %v773
        %v775 = vadd.f32 %v727, %v735
        %v776 = vadd.f32 %v775, %v743
        %v777 = vadd.f32 %v776, %v751
        %v778 = vrot.slane %v777, 4
        %v779 = vadd.f32 %v777, %v778
        %v780 = vrot.slane %v779, 2
        %v781 = vadd.f32 %v779, %v780
        %v782 = vrot.slane %v781, 1
        %v783 = vadd.f32 %v781, %v782
        %v784 = vadd.f32 %v728, %v736
        %v785 = vadd.f32 %v784, %v744
        %v786 = vadd.f32 %v785, %v752
        %v787 = vrot.slane %v786, 4
        %v788 = vadd.f32 %v786, %v787
        %v789 = vrot.slane %v788, 2
        %v790 = vadd.f32 %v788, %v789
        %v791 = vrot.slane %v790, 1
        %v792 = vadd.f32 %v790, %v791
        %v793 = vadd.f32 %v729, %v737
        %v794 = vadd.f32 %v793, %v745
        %v795 = vadd.f32 %v794, %v753
        %v796 = vrot.slane %v795, 4
        %v797 = vadd.f32 %v795, %v796
        %v798 = vrot.slane %v797, 2
        %v799 = vadd.f32 %v797, %v798
        %v800 = vrot.slane %v799, 1
        %v801 = vadd.f32 %v799, %v800
        %v802 = vadd.f32 %v730, %v738
        %v803 = vadd.f32 %v802, %v746
        %v804 = vadd.f32 %v803, %v754
        %v805 = vrot.slane %v804, 4
        %v806 = vadd.f32 %v804, %v805
        %v807 = vrot.slane %v806, 2
        %v808 = vadd.f32 %v806, %v807
        %v809 = vrot.slane %v808, 1
        %v810 = vadd.f32 %v808, %v809
        %v811 = vadd.f32 %v731, %v739
        %v812 = vadd.f32 %v811, %v747
        %v813 = vadd.f32 %v812, %v755
        %v814 = vrot.slane %v813, 4
        %v815 = vadd.f32 %v813, %v814
        %v816 = vrot.slane %v815, 2
        %v817 = vadd.f32 %v815, %v816
        %v818 = vrot.slane %v817, 1
        %v819 = vadd.f32 %v817, %v818
        %v820 = vadd.f32 %v732, %v740
        %v821 = vadd.f32 %v820, %v748
        %v822 = vadd.f32 %v821, %v756
        %v823 = vrot.slane %v822, 4
        %v824 = vadd.f32 %v822, %v823
        %v825 = vrot.slane %v824, 2
        %v826 = vadd.f32 %v824, %v825
        %v827 = vrot.slane %v826, 1
        %v828 = vadd.f32 %v826, %v827
        %s829 = sld [smem:[#allocation3 + %s21]]
        %v830 = vstv %s829
        %v831 = vadd.f32 %v765, %v830
        %v832 = vadd.f32 %v774, %v830
        %v833 = vadd.f32 %v783, %v830
        %v834 = vadd.f32 %v792, %v830
        %v835 = vadd.f32 %v801, %v830
        %v836 = vadd.f32 %v810, %v830
        %v837 = vadd.f32 %v819, %v830
        %v838 = vadd.f32 %v828, %v830
        %v839 = vsub.f32 0.0, %v831
        %v840 = vsub.f32 0.0, %v832
        %v841 = vsub.f32 0.0, %v833
        %v842 = vsub.f32 0.0, %v834
        %v843 = vsub.f32 0.0, %v835
        %v844 = vsub.f32 0.0, %v836
        %v845 = vsub.f32 0.0, %v837
        %v846 = vsub.f32 0.0, %v838
        %v847 = vmul.f32 %v839, 1.442695
        %v848 = vpow.pop %v847
        %v849 = vmul.f32 %v840, 1.442695
        %v850 = vpow.pop %v849
        %v851 = vmul.f32 %v841, 1.442695
        %v852 = vpow.pop %v851
        %v853 = vmul.f32 %v842, 1.442695
        %v854 = vpow.pop %v853
        %v855 = vmul.f32 %v843, 1.442695
        %v856 = vpow.pop %v855
        %v857 = vmul.f32 %v844, 1.442695
        %v858 = vpow.pop %v857
        %v859 = vmul.f32 %v845, 1.442695
        %v860 = vpow.pop %v859
        %v861 = vmul.f32 %v846, 1.442695
        %v862 = vpow.pop %v861
        %v863 = vadd.f32 %v848, 1.0
        %v864 = vadd.f32 %v850, 1.0
        %v865 = vadd.f32 %v852, 1.0
        %v866 = vadd.f32 %v854, 1.0
        %v867 = vadd.f32 %v856, 1.0
        %v868 = vadd.f32 %v858, 1.0
        %v869 = vadd.f32 %v860, 1.0
        %v870 = vadd.f32 %v862, 1.0
        %v871 = vrcp.pop %v863
        %v872 = vrcp.pop %v864
        %v873 = vrcp.pop %v865
        %v874 = vrcp.pop %v866
        %v875 = vrcp.pop %v867
        %v876 = vrcp.pop %v868
        %v877 = vrcp.pop %v869
        %v878 = vrcp.pop %v870
        %v887 = vrot.slane %v872, 7
        %v888 = vrot.slane %v873, 6
        %v889 = vrot.slane %v874, 5
        %v890 = vrot.slane %v875, 4
        %v891 = vrot.slane %v876, 3
        %v892 = vrot.slane %v877, 2
        %v893 = vrot.slane %v878, 1
        %vm894 = vcmask 1040384
        %v895 = vsel %vm894, %v871, %v887
        %vm896 = vcmask 1042434
        %v897 = vsel %vm896, %v888, %v889
        %vm898 = vcmask 1041408
        %v899 = vsel %vm898, %v895, %v897
        %vm900 = vcmask 1044484
        %v901 = vsel %vm900, %v890, %v891
        %vm902 = vcmask 1046534
        %v903 = vsel %vm902, %v892, %v893
        %vm904 = vcmask 1045508
        %v905 = vsel %vm904, %v901, %v903
        %vm906 = vcmask 1043456
        %v907 = vsel %vm906, %v899, %v905
        %909 = vst [vmem:[%s373] sm:$0xff] %v907
        %s910 = smul.u32 8, %s22
        %p911 = scmp.lt.s32.totalorder %s21, 2
        %s912 = scalar_select %p911, %s21, 2
        %p913 = scmp.lt.s32.totalorder %s910, 15
        %s914 = scalar_select %p913, %s910, 15
        %s915 = smul.addr %s912, 16
        %s916 = sadd.s32 %s914, %s915
        %s917 = scalar_lea.vmem %s5, %s916
        // Predicated region
        $region68: #{msmrfnet_forward.1} parent=58 // pred_check
          %p918 = pneg %p176
        $region69: #{msmrfnet_forward.1} parent=58 // pred_check_branch
          %920 = sbr.rel (%p918) target = $region71
        $region70: #{msmrfnet_forward.1} parent=58 // pred_region
          %s921 = smul.u32 8, %s22
        $region71: #{msmrfnet_forward.1} parent=58 // pred_fallthru
          _
      $region59: #{msmrfnet_forward.1} parent=5 // pred_fallthru
        _
      %p922 = scmp.le.s32.totalorder 2, %s12
      // Predicated region
      $region72: #{msmrfnet_forward.1} parent=5 // pred_check
        %p923 = pneg %p922
      $region73: #{msmrfnet_forward.1} parent=5 // pred_check_branch
        %925 = sbr.rel (%p923) target = $region75
      $region74: #{msmrfnet_forward.1} parent=5 // pred_region
        %s926 = ssub.s32 %s12, 2
        // Predicated region
        $region76: #{msmrfnet_forward.1} parent=74 // pred_check
          %p927 = pneg %p182
        $region77: #{msmrfnet_forward.1} parent=74 // pred_check_branch
          %929 = sbr.rel (%p927) target = $region79
        $region78: #{msmrfnet_forward.1} parent=74 // pred_region
          %s930 = smul.u32 8, %s24
          %p931 = scmp.lt.s32.totalorder %s23, 2
          %s932 = scalar_select %p931, %s23, 2
          %p933 = scmp.lt.s32.totalorder %s930, 15
          %s934 = scalar_select %p933, %s930, 15
          %s935 = smul.addr %s932, 16
          %s936 = sadd.s32 %s934, %s935
          %s937 = scalar_lea.vmem %s5, %s936
        $region79: #{msmrfnet_forward.1} parent=74 // pred_fallthru
          _
      $region75: #{msmrfnet_forward.1} parent=5 // pred_fallthru
        _
    $region6: #{msmrfnet_forward.1} parent=1 // loop_footer
      %s16 = sadd.s32 1, %s12
    $region7: #{msmrfnet_forward.1} parent=1 // loop_footer_branch
      %11 = sbr.rel target = $region3
    $region8: #{msmrfnet_forward.1} parent=1 // loop_exit
      _
    %938 = vsyncpa [#allocation4], 1
    %s939 = scalar_lea.sflag [#allocation4], 1
    %940 = vsyncpa %s939, 1

</llo_original>
